<compile_context>
chip_gen: v6e
topology: v6e:2x2x1
jax: 0.10.0
libtpu: 0.0.40
codegen_flags: <defaults>
</compile_context>

<pallas_src>
import jax
import jax.numpy as jnp
from jax.experimental import pallas as pl
from jax.experimental.pallas import tpu as pltpu

BN_EPS = 1e-5  # PyTorch BatchNorm1d default eps


def _round_up(x, m):
    return ((x + m - 1) // m) * m


def _vmem_capacity_bytes():
    try:
        return int(pltpu.get_tpu_info().vmem_capacity_bytes)
    except Exception:
        return 64 << 20  # conservative fallback: v7x per-TensorCore VMEM


def _make_kernel(*, normalization, acc_is_out):
    """Kernel factory.  acc_is_out: accumulate directly into o_ref (f32 out)."""

    def kernel(x_ref, w_ref, b_ref, o_ref, *scratch):
        # x_ref: (N, tk)  w_ref: (tk, tm)  b_ref: (1, tm) f32  o_ref: (N, tm)
        acc_ref = o_ref if acc_is_out else scratch[0]
        k = pl.program_id(1)

        @pl.when(k == 0)
        def _init():
            # Fold the bias into the accumulator init: saves an (N, tm) VPU
            # add and a bias read in the non-overlapped epilogue.
            acc_ref[...] = jnp.broadcast_to(b_ref[...], acc_ref.shape)

        # Native-dtype operands straight to the MXU; accumulate in f32.
        # TODO(synk): on v5e, casting x/weight_t to bf16 here (keeping the f32
        # accumulator and epilogue) ~doubles MXU throughput if the precision
        # budget allows.
        acc_ref[...] += jnp.dot(x_ref[...], w_ref[...],
                                preferred_element_type=jnp.float32)

        @pl.when(k == pl.num_programs(1) - 1)
        def _finalize():
            y = acc_ref[...]
            if normalization:
                # BatchNorm1d (training mode, affine=False): exact full-batch,
                # biased-variance stats (the whole batch is resident in this
                # tile).  One-pass stats: var = E[y^2] - mean^2 (f32; the BN
                # eps keeps the tiny cancellation benign, clamped at 0).
                inv_n = 1.0 / y.shape[0]
                mean = jnp.sum(y, axis=0, keepdims=True) * inv_n
                ex2 = jnp.sum(y * y, axis=0, keepdims=True) * inv_n
                var = jnp.maximum(ex2 - mean * mean, 0.0)
                y = (y - mean) * jax.lax.rsqrt(var + BN_EPS)
            # Swish: y * sigmoid(y)  (signal_preserving=False default).
            # TODO(synk): signal_preserving=True rescales by a repo-defined
            # constant; not reproducible here.
            y = y * jax.nn.sigmoid(y)
            o_ref[...] = y.astype(o_ref.dtype)

    return kernel


def _plan(N, K, M, itm_x, itm_w, itm_o, acc_is_out, budget, tm_user, tk_user):
    """Pick (tk, tm) so the double-buffered working set fits the VMEM budget.

    Prefers tk == Kp (single K step): the x block index is then constant over
    the whole grid, so x is DMA'd from HBM exactly once.
    """
    K128 = _round_up(K, 128)
    M128 = _round_up(M, 128)

    def need(tk, tm):
        return (2 * N * tk * itm_x          # x tiles (double-buffered alloc)
                + 2 * tk * tm * itm_w       # weight tiles
                + 2 * tm * 4                # bias tiles
                + 2 * N * tm * itm_o        # output tiles
                + (0 if acc_is_out else N * tm * 4))   # f32 accumulator

    def fits(tk, tm):
        return need(tk, tm) <= budget

    tm = tm_user if tm_user is not None else min(256, M128)  # MXU-width tiles

    if tk_user is not None:
        tk = tk_user
    elif fits(K128, tm):
        tk = K128                     # x-resident: fetched from HBM once
    else:
        tk = min(512, K128)           # stream x per K step (fallback)

    # Shrink until the working set fits the per-core VMEM budget.
    while not fits(tk, tm):
        if tk > 128:
            tk = max(128, (tk // 2) // 128 * 128)
        elif tm > 128:
            tm = max(128, (tm // 2) // 128 * 128)
        else:
            # TODO(synk): batches this large need an N-blocked two-pass BN;
            # the full batch must stay resident for exact BatchNorm stats, so
            # proceed with the smallest tiles (compile may still reject).
            break

    # Megacore (v7x): prefer an even M-tile count so the "parallel" axis
    # splits evenly across the two TensorCores.
    if tm_user is None:
        n_mt = _round_up(M, tm) // tm
        if n_mt > 1 and n_mt % 2 == 1:
            for tm_alt in (tm + 128, tm - 128):
                if (tm_alt >= 128
                        and (_round_up(M, tm_alt) // tm_alt) % 2 == 0
                        and fits(tk, tm_alt)):
                    tm = tm_alt
                    break

    return tk, tm, need(tk, tm)


def linear_block(x, weight_t, bias, *, normalization=True, tm=None, tk=None):
    """x: (N, K); weight_t: (K, M) pre-transposed once at init; bias: (M,)."""
    N, K = x.shape
    K2, M = weight_t.shape
    assert K == K2, "weight_t must be (in_features, out_features)"

    out_dtype = x.dtype
    itm_x = x.dtype.itemsize
    itm_w = weight_t.dtype.itemsize
    itm_o = jnp.dtype(out_dtype).itemsize
    acc_is_out = out_dtype == jnp.float32   # accumulate straight into o_ref

    cap = _vmem_capacity_bytes()
    budget = max(cap - (8 << 20), 16 << 20)   # headroom for internal scratch

    tk, tm, vmem_est = _plan(N, K, M, itm_x, itm_w, itm_o, acc_is_out,
                             budget, tm_user=tm, tk_user=tk)

    Kp = _round_up(K, tk)
    Mp = _round_up(M, tm)

    # Pad K (zero contributions) and M (zero features, sliced off afterwards)
    # so every block is full and the output stays lane-dense.  N is NOT
    # padded: BN statistics must be over the true batch.
    if Kp != K:
        x = jnp.pad(x, ((0, 0), (0, Kp - K)))
        weight_t = jnp.pad(weight_t, ((0, Kp - K), (0, 0)))
    if Mp != M:
        weight_t = jnp.pad(weight_t, ((0, 0), (0, Mp - M)))
        bias = jnp.pad(bias, (0, Mp - M))
    b2 = bias.reshape(1, Mp).astype(jnp.float32)

    grid = (Mp // tm, Kp // tk)
    # When Kp == tk the K grid axis has size 1, so the x block index (0, k) is
    # constant over the whole grid: x is DMA'd from HBM exactly once.
    x_reads = 1 if Kp == tk else grid[0]

    kernel = _make_kernel(normalization=normalization, acc_is_out=acc_is_out)
    scratch = [] if acc_is_out else [pltpu.VMEM((N, tm), jnp.float32)]

    # Generation-aware limit: cover the real requirement (plus slack), gated
    # against the physical per-core capacity.
    vmem_limit = int(min(max(int(vmem_est * 1.25), 16 << 20), cap - (4 << 20)))

    out = pl.pallas_call(
        kernel,
        out_shape=jax.ShapeDtypeStruct((N, Mp), out_dtype),
        grid_spec=pltpu.PrefetchScalarGridSpec(
            num_scalar_prefetch=0,
            grid=grid,
            in_specs=[
                pl.BlockSpec((N, tk), lambda i, k: (0, k)),    # x
                pl.BlockSpec((tk, tm), lambda i, k: (k, i)),   # weight_t
                pl.BlockSpec((1, tm), lambda i, k: (0, i)),    # bias
            ],
            out_specs=pl.BlockSpec((N, tm), lambda i, k: (0, i)),
            scratch_shapes=scratch,
        ),
        compiler_params=pltpu.CompilerParams(
            dimension_semantics=("parallel", "arbitrary"),
            vmem_limit_bytes=vmem_limit,
        ),
        cost_estimate=pl.CostEstimate(
            flops=2 * N * Kp * Mp,
            transcendentals=N * Mp,
            bytes_accessed=(x_reads * N * Kp * itm_x + Kp * Mp * itm_w
                            + Mp * 4 + N * Mp * itm_o),
        ),
    )(x, weight_t, b2)

    return out[:, :M] if Mp != M else out


def reference(x, weight_t, bias, *, normalization=True):
    y = jnp.dot(x.astype(jnp.float32), weight_t.astype(jnp.float32),
                precision=jax.lax.Precision.HIGHEST) + bias
    if normalization:
        mean = jnp.mean(y, axis=0, keepdims=True)
        var = jnp.mean((y - mean) ** 2, axis=0, keepdims=True)
        y = (y - mean) / jnp.sqrt(var + BN_EPS)
    return y * jax.nn.sigmoid(y)


if __name__ == "__main__":
    key = jax.random.PRNGKey(0)
    kx, kw, kb = jax.random.split(key, 3)

    # Small shapes that still exercise M padding (320 -> 512) and two
    # "parallel" M tiles.  Inputs are rounded to bf16-representable values so
    # the check is insensitive to the MXU's f32 pass count.
    N, in_features, out_features = 128, 1024, 320

    x = jax.random.normal(kx, (N, in_features), dtype=jnp.float32)
    bound = 1.0 / (in_features ** 0.5)
    weight = jax.random.uniform(kw, (out_features, in_features),
                                minval=-bound, maxval=bound, dtype=jnp.float32)
    bias = jax.random.uniform(kb, (out_features,),
                              minval=-bound, maxval=bound, dtype=jnp.float32)
    x = x.astype(jnp.bfloat16).astype(jnp.float32)
    weight = weight.astype(jnp.bfloat16).astype(jnp.float32)

    # One-time layout transform at parameter-init time (outside the call path):
    weight_t = jnp.asarray(weight.T)   # (in_features, out_features)

    ref = reference(x, weight_t, bias)

    # 1) Planner defaults: x-resident single-K-step path (x read from HBM once).
    out = linear_block(x, weight_t, bias)
    jax.block_until_ready(out)
    assert out.shape == (N, out_features)
    assert jnp.allclose(out, ref, atol=1e-3, rtol=1e-3), "resident path mismatch"

    # 2) Explicit K-blocking (test override only, not a production default):
    #    exercises the multi-step reduction / bias-fold init / finalize path.
    out2 = linear_block(x, weight_t, bias, tm=256, tk=512)
    jax.block_until_ready(out2)
    assert jnp.allclose(out2, ref, atol=1e-3, rtol=1e-3), "K-blocked path mismatch"

    print("KERNEL_OK")
</pallas_src>

<mosaic_0001>
module attributes {stable_mosaic.version = 11 : i64} {
  func.func @kernel(%arg0: i32, %arg1: i32, %arg2: memref<128x1024xf32, #tpu.memory_space<vmem>>, %arg3: memref<1024x256xf32, #tpu.memory_space<vmem>>, %arg4: memref<1x256xf32, #tpu.memory_space<vmem>>, %arg5: memref<128x256xf32, #tpu.memory_space<vmem>>) attributes {dimension_semantics = [#tpu.dimension_semantics<parallel>, #tpu.dimension_semantics<arbitrary>], iteration_bounds = array<i64: 2, 1>, scalar_prefetch = 0 : i64, scratch_operands = 0 : i64, tpu.core_type = #tpu.core_type<tc>, window_params = [{transform_indices = @transform_0, window_bounds = array<i64: 128, 1024>}, {transform_indices = @transform_1, window_bounds = array<i64: 1024, 256>}, {transform_indices = @transform_2, window_bounds = array<i64: 1, 256>}, {transform_indices = @transform_3, window_bounds = array<i64: 128, 256>}]} {
    %c0_i32 = arith.constant 0 : i32
    %0 = arith.cmpi eq, %arg1, %c0_i32 : i32
    %1 = arith.extui %0 : i1 to i32
    %c0_i32_0 = arith.constant 0 : i32
    %2 = arith.cmpi ne, %1, %c0_i32_0 : i32
    scf.if %2 {
      %c0_10 = arith.constant 0 : index
      %c0_11 = arith.constant 0 : index
      %12 = vector.load %arg4[%c0_10, %c0_11] : memref<1x256xf32, #tpu.memory_space<vmem>>, vector<1x256xf32>
      %13 = vector.shape_cast %12 : vector<1x256xf32> to vector<1x256xf32>
      %14 = vector.broadcast %13 : vector<1x256xf32> to vector<128x256xf32>
      %c0_12 = arith.constant 0 : index
      %c0_13 = arith.constant 0 : index
      %15 = vector.load %arg5[%c0_12, %c0_13] : memref<128x256xf32, #tpu.memory_space<vmem>>, vector<128x256xf32>
      tpu.vector_store %arg5[%c0_12, %c0_13], %14 {strides = array<i32>} : memref<128x256xf32, #tpu.memory_space<vmem>>, vector<128x256xf32>,
    } else {
    }
    %c0 = arith.constant 0 : index
    %c0_1 = arith.constant 0 : index
    %3 = vector.load %arg5[%c0, %c0_1] : memref<128x256xf32, #tpu.memory_space<vmem>>, vector<128x256xf32>
    %c0_2 = arith.constant 0 : index
    %c0_3 = arith.constant 0 : index
    %4 = vector.load %arg2[%c0_2, %c0_3] : memref<128x1024xf32, #tpu.memory_space<vmem>>, vector<128x1024xf32>
    %c0_4 = arith.constant 0 : index
    %c0_5 = arith.constant 0 : index
    %5 = vector.load %arg3[%c0_4, %c0_5] : memref<1024x256xf32, #tpu.memory_space<vmem>>, vector<1024x256xf32>
    %cst = arith.constant dense<0.000000e+00> : vector<128x256xf32>
    %6 = tpu.matmul %4, %5, %cst {dimension_numbers = #tpu.dot_dimension_numbers<[1], [0], [0], [1], [0, 0, 1, 1], [], []>} : vector<128x1024xf32>, vector<1024x256xf32>, vector<128x256xf32> -> vector<128x256xf32>
    %7 = arith.addf %3, %6 : vector<128x256xf32>
    %c0_6 = arith.constant 0 : index
    %c0_7 = arith.constant 0 : index
    %8 = vector.load %arg5[%c0_6, %c0_7] : memref<128x256xf32, #tpu.memory_space<vmem>>, vector<128x256xf32>
    tpu.vector_store %arg5[%c0_6, %c0_7], %7 {strides = array<i32>} : memref<128x256xf32, #tpu.memory_space<vmem>>, vector<128x256xf32>,
    %c0_i32_8 = arith.constant 0 : i32
    %9 = arith.cmpi eq, %arg1, %c0_i32_8 : i32
    %10 = arith.extui %9 : i1 to i32
    %c0_i32_9 = arith.constant 0 : i32
    %11 = arith.cmpi ne, %10, %c0_i32_9 : i32
    scf.if %11 {
      %c0_10 = arith.constant 0 : index
      %c0_11 = arith.constant 0 : index
      %12 = vector.load %arg5[%c0_10, %c0_11] : memref<128x256xf32, #tpu.memory_space<vmem>>, vector<128x256xf32>
      %cst_12 = arith.constant dense<0.000000e+00> : vector<256xf32>
      %13 = vector.multi_reduction <add>, %12, %cst_12 [0] : vector<128x256xf32> to vector<256xf32>
      %14 = vector.shape_cast %13 : vector<256xf32> to vector<1x256xf32>
      %cst_13 = arith.constant 7.812500e-03 : f32
      %15 = vector.broadcast %cst_13 : f32 to vector<1x256xf32>
      %16 = arith.mulf %14, %15 : vector<1x256xf32>
      %17 = arith.mulf %12, %12 : vector<128x256xf32>
      %cst_14 = arith.constant dense<0.000000e+00> : vector<256xf32>
      %18 = vector.multi_reduction <add>, %17, %cst_14 [0] : vector<128x256xf32> to vector<256xf32>
      %19 = vector.shape_cast %18 : vector<256xf32> to vector<1x256xf32>
      %cst_15 = arith.constant 7.812500e-03 : f32
      %20 = vector.broadcast %cst_15 : f32 to vector<1x256xf32>
      %21 = arith.mulf %19, %20 : vector<1x256xf32>
      %22 = arith.mulf %16, %16 : vector<1x256xf32>
      %23 = arith.subf %21, %22 : vector<1x256xf32>
      %cst_16 = arith.constant 0.000000e+00 : f32
      %24 = vector.broadcast %cst_16 : f32 to vector<1x256xf32>
      %25 = arith.maximumf %23, %24 : vector<1x256xf32>
      %26 = vector.broadcast %16 : vector<1x256xf32> to vector<128x256xf32>
      %27 = arith.subf %12, %26 : vector<128x256xf32>
      %cst_17 = arith.constant 9.99999974E-6 : f32
      %28 = vector.broadcast %cst_17 : f32 to vector<1x256xf32>
      %29 = arith.addf %25, %28 : vector<1x256xf32>
      %30 = math.rsqrt %29 : vector<1x256xf32>
      %31 = vector.broadcast %30 : vector<1x256xf32> to vector<128x256xf32>
      %32 = arith.mulf %27, %31 : vector<128x256xf32>
      %33 = arith.negf %32 : vector<128x256xf32>
      %34 = math.exp %33 : vector<128x256xf32>
      %cst_18 = arith.constant 1.000000e+00 : f32
      %35 = vector.broadcast %cst_18 : f32 to vector<128x256xf32>
      %36 = arith.addf %35, %34 : vector<128x256xf32>
      %37 = arith.divf %35, %36 : vector<128x256xf32>
      %38 = arith.mulf %32, %37 : vector<128x256xf32>
      %c0_19 = arith.constant 0 : index
      %c0_20 = arith.constant 0 : index
      %39 = vector.load %arg5[%c0_19, %c0_20] : memref<128x256xf32, #tpu.memory_space<vmem>>, vector<128x256xf32>
      tpu.vector_store %arg5[%c0_19, %c0_20], %38 {strides = array<i32>} : memref<128x256xf32, #tpu.memory_space<vmem>>, vector<128x256xf32>,
    } else {
    }
    return
  }
  func.func @transform_0(%arg0: i32, %arg1: i32) -> (i32, i32) {
    %c0_i32 = arith.constant 0 : i32
    %c0_i32_0 = arith.constant 0 : i32
    return %c0_i32, %arg1 : i32, i32
  }
  func.func @transform_1(%arg0: i32, %arg1: i32) -> (i32, i32) {
    %c0_i32 = arith.constant 0 : i32
    return %arg1, %arg0 : i32, i32
  }
  func.func @transform_2(%arg0: i32, %arg1: i32) -> (i32, i32) {
    %c0_i32 = arith.constant 0 : i32
    %c0_i32_0 = arith.constant 0 : i32
    return %c0_i32, %arg0 : i32, i32
  }
  func.func @transform_3(%arg0: i32, %arg1: i32) -> (i32, i32) {
    %c0_i32 = arith.constant 0 : i32
    %c0_i32_0 = arith.constant 0 : i32
    return %c0_i32, %arg0 : i32, i32
  }
}

</mosaic_0001>

<llo_original>
// kernel: tpu_custom_call.1
$region0: #{tpu_custom_call.1}
  #allocation0 [shape = 'u32[]', space=smem, size = 0x4, offset = 0x4, fixed_abs, tag = 'smem constant byte address 0x4 - core index']
  #allocation1 [shape = 'u32[144,128]{1,0:T(1,128)}', space=vmem, size = 0x12000, scoped, tag = 'internal scratch']
  %s0 = inlined_call_operand.hbm [shape: f32[128,1024], index: 0, kind: input, shape index: {}]
  %s1 = inlined_call_operand.hbm [shape: f32[1024,512], index: 1, kind: input, shape index: {}]
  %s2 = inlined_call_operand.hbm [shape: f32[1,512], index: 2, kind: input, shape index: {}]
  %s3 = inlined_call_operand.hbm [shape: f32[128,512], index: 3, kind: output, shape index: {}]
  %s4 = sld [smem:[#allocation0]]
  $region65: #{tpu_custom_call.1} parent=0
    _
  %s6 = ssub.s32 1, %s4
  %s7 = scalar_select 0, %s6, %s4
  $region1: #{tpu_custom_call.1} parent=0
    #allocation2 [shape = 'u8[524288]{0}', space=vmem, size = 0x80000, scoped, tag = 'input window, operand 0, single buffered']
    #allocation3 [shape = 's32[2]{0}', space=sflag, size = 0x8, scoped, tag = 'scoped memory for tpu_custom_call.1']
    #allocation4 [shape = 's32[2]{0}', space=sflag, size = 0x8, scoped, tag = 'scoped memory for tpu_custom_call.1']
    #allocation5 [shape = 'u8[2097152]{0}', space=vmem, size = 0x200000, scoped, tag = 'input window, operand 1']
    #allocation6 [shape = 's32[2]{0}', space=sflag, size = 0x8, scoped, tag = 'scoped memory for tpu_custom_call.1']
    #allocation7 [shape = 'u8[2048]{0}', space=vmem, size = 0x800, scoped, tag = 'input window, operand 2']
    #allocation8 [shape = 'u8[262144]{0}', space=vmem, size = 0x40000, scoped, tag = 'output window, operand 0']
    %8 = vsyncpa [#allocation3], 0
    %9 = vsyncpa [#allocation6], 0
    %s10 = scalar_lea.sflag [#allocation6], 1
    %11 = vsyncpa %s10, 0
    %12 = vsyncpa [#allocation4], 0
    %s13 = scalar_lea.sflag [#allocation4], 1
    %14 = vsyncpa %s13, 0
    loop: start=0, step=1, limit=4
    $region2: #{tpu_custom_call.1} parent=1 // loop_pre_header
      _
    $region3: #{tpu_custom_call.1} parent=1 // loop_header
      %s16 = sphi 0, %s20
      %p17 = scmp.ge.s32.totalorder %s16, 4
      %s23 = sphi 0, %s35
      %s24 = sphi 0, %s31
      %s25 = sphi 0, %s23
      %s26 = sphi 0, %s24
      %s27 = sphi 0, %s25
      %s28 = sphi 0, %s26
      %s38 = sphi 0, %s40
      %s41 = sphi 0, %s38
      %s42 = sphi 0, %s41
      %s58 = sphi 0, %s42
      %s66 = sphi 0, %s68
      %s69 = sphi 0, %s66
      %s70 = sphi 0, %s69
      %s86 = sphi 0, %s70
      %s92 = sphi 0, %s94
      %s95 = sphi 0, %s92
      %s96 = sphi 0, %s95
      %s112 = sphi 0, %s96
      %s118 = sphi 0, %s120
      %s121 = sphi 0, %s118
      %s122 = sphi 0, %s121
      %s138 = sphi 0, %s122
    $region4: #{tpu_custom_call.1} parent=1 // loop_header_branch
      %19 = sbr.rel (%p17) target = $region8
    $region5: #{tpu_custom_call.1} parent=1 // loop_body
      %s21 = ssub.s32 %s16, 1
      %s22 = ssub.s32 %s16, 2
      %s29 = sadd.s32 1, %s24
      %p30 = scmp.ge.s32.totalorder %s29, 1
      %s31 = scalar_select %p30, 0, %s29
      %s32 = sadd.s32 1, %s23
      %s33 = scalar_select %p30, %s32, %s23
      %p34 = scmp.ge.s32.totalorder %s33, 2
      %s35 = scalar_select %p34, 0, %s33
      %s36 = ssub.s32 %s24, %s31
      %p37 = scmp.eq.s32.totalorder %s36, 0
      %s39 = sadd.s32 %s38, 1
      %s40 = scalar_select %p37, %s38, %s39
      %p43 = pneg %p37
      %p44 = scmp.eq.s32.totalorder %s16, 1
      %p45 = por %p43, %p44
      %p46 = scmp.ne.s32.totalorder %s38, %s41
      %p47 = scmp.eq.s32.totalorder %s16, 0
      %p48 = por %p46, %p47
      %p49 = scmp.ne.s32.totalorder %s38, %s41
      %p50 = scmp.eq.s32.totalorder %s21, 1
      %p51 = por %p49, %p50
      %p52 = scmp.ne.s32.totalorder %s41, %s42
      %p53 = scmp.eq.s32.totalorder %s21, 0
      %p54 = por %p52, %p53
      %p55 = scmp.ne.s32.totalorder %s41, %s42
      %p56 = scmp.eq.s32.totalorder %s22, 1
      %p57 = por %p55, %p56
      %p59 = scmp.ne.s32.totalorder %s42, %s58
      %p60 = scmp.eq.s32.totalorder %s22, 0
      %p61 = por %p59, %p60
      %s62 = ssub.s32 %s24, %s31
      %s63 = ssub.s32 %s23, %s35
      %s64 = sor.u32 %s62, %s63
      %p65 = scmp.eq.s32.totalorder %s64, 0
      %s67 = sadd.s32 %s66, 1
      %s68 = scalar_select %p65, %s66, %s67
      %p71 = pneg %p65
      %p72 = scmp.eq.s32.totalorder %s16, 1
      %p73 = por %p71, %p72
      %p74 = scmp.ne.s32.totalorder %s66, %s69
      %p75 = scmp.eq.s32.totalorder %s16, 0
      %p76 = por %p74, %p75
      %p77 = scmp.ne.s32.totalorder %s66, %s69
      %p78 = scmp.eq.s32.totalorder %s21, 1
      %p79 = por %p77, %p78
      %p80 = scmp.ne.s32.totalorder %s69, %s70
      %p81 = scmp.eq.s32.totalorder %s21, 0
      %p82 = por %p80, %p81
      %p83 = scmp.ne.s32.totalorder %s69, %s70
      %p84 = scmp.eq.s32.totalorder %s22, 1
      %p85 = por %p83, %p84
      %p87 = scmp.ne.s32.totalorder %s70, %s86
      %p88 = scmp.eq.s32.totalorder %s22, 0
      %p89 = por %p87, %p88
      %s90 = ssub.s32 %s23, %s35
      %p91 = scmp.eq.s32.totalorder %s90, 0
      %s93 = sadd.s32 %s92, 1
      %s94 = scalar_select %p91, %s92, %s93
      %p97 = pneg %p91
      %p98 = scmp.eq.s32.totalorder %s16, 1
      %p99 = por %p97, %p98
      %p100 = scmp.ne.s32.totalorder %s92, %s95
      %p101 = scmp.eq.s32.totalorder %s16, 0
      %p102 = por %p100, %p101
      %p103 = scmp.ne.s32.totalorder %s92, %s95
      %p104 = scmp.eq.s32.totalorder %s21, 1
      %p105 = por %p103, %p104
      %p106 = scmp.ne.s32.totalorder %s95, %s96
      %p107 = scmp.eq.s32.totalorder %s21, 0
      %p108 = por %p106, %p107
      %p109 = scmp.ne.s32.totalorder %s95, %s96
      %p110 = scmp.eq.s32.totalorder %s22, 1
      %p111 = por %p109, %p110
      %p113 = scmp.ne.s32.totalorder %s96, %s112
      %p114 = scmp.eq.s32.totalorder %s22, 0
      %p115 = por %p113, %p114
      %s116 = ssub.s32 %s23, %s35
      %p117 = scmp.eq.s32.totalorder %s116, 0
      %s119 = sadd.s32 %s118, 1
      %s120 = scalar_select %p117, %s118, %s119
      %p123 = pneg %p117
      %p124 = scmp.eq.s32.totalorder %s16, 1
      %p125 = por %p123, %p124
      %p126 = scmp.ne.s32.totalorder %s118, %s121
      %p127 = scmp.eq.s32.totalorder %s16, 0
      %p128 = por %p126, %p127
      %p129 = scmp.ne.s32.totalorder %s118, %s121
      %p130 = scmp.eq.s32.totalorder %s21, 1
      %p131 = por %p129, %p130
      %p132 = scmp.ne.s32.totalorder %s121, %s122
      %p133 = scmp.eq.s32.totalorder %s21, 0
      %p134 = por %p132, %p133
      %p135 = scmp.ne.s32.totalorder %s121, %s122
      %p136 = scmp.eq.s32.totalorder %s22, 1
      %p137 = por %p135, %p136
      %p139 = scmp.ne.s32.totalorder %s122, %s138
      %p140 = scmp.eq.s32.totalorder %s22, 0
      %p141 = por %p139, %p140
      %p142 = scmp.le.s32.totalorder 1, %s16
      %p143 = scmp.lt.s32.totalorder %s16, 3
      %p144 = pnand %p142, %p143
      %p145 = pneg %p144
      // Predicated region
      $region9: #{tpu_custom_call.1} parent=5 // pred_check
        _
      $region10: #{tpu_custom_call.1} parent=5 // pred_check_branch
        %147 = sbr.rel (%p144) target = $region12
      $region11: #{tpu_custom_call.1} parent=5 // pred_region
        %s148 = ssub.s32 %s16, 1
        // Predicated region
        $region13: #{tpu_custom_call.1} parent=11 // pred_check
          %p149 = pneg %p54
        $region14: #{tpu_custom_call.1} parent=11 // pred_check_branch
          %151 = sbr.rel (%p149) target = $region16
        $region15: #{tpu_custom_call.1} parent=11 // pred_region
          %s152 = smul.u32 8, %s26
          %s154 = ssub.s32 16384, 16384
          %155 = vsyncadd [#allocation3], %s154
          %s156 = smul.addr %s152, 128
          %s157 = scalar_lea.hbm %s0, %s156
          %s158 = sshll.u32 [#allocation2], 4
          %s159 = int_to_ptr.vmem [resolvable:$true] %s158
          %164 = dma.hbm_to_vmem [thread:$0]  %s157, 16384, %s159, [#allocation3], 1024, 1024, 64
        $region16: #{tpu_custom_call.1} parent=11 // pred_fallthru
          _
      $region12: #{tpu_custom_call.1} parent=5 // pred_fallthru
        _
      %p165 = scmp.lt.s32.totalorder %s16, 2
      // Predicated region
      $region17: #{tpu_custom_call.1} parent=5 // pred_check
        %p166 = pneg %p165
      $region18: #{tpu_custom_call.1} parent=5 // pred_check_branch
        %168 = sbr.rel (%p166) target = $region20
      $region19: #{tpu_custom_call.1} parent=5 // pred_region
        // Predicated region
        $region21: #{tpu_custom_call.1} parent=19 // pred_check
          %p169 = pneg %p76
        $region22: #{tpu_custom_call.1} parent=19 // pred_check_branch
          %171 = sbr.rel (%p169) target = $region24
        $region23: #{tpu_custom_call.1} parent=19 // pred_region
          %s172 = sand.u32 %s16, 1
          %s173 = scalar_lea.sflag [#allocation6], %s172
          %s174 = sand.u32 %s66, 1
          %s175 = smul.addr %s174, 2048
          %s176 = scalar_lea.vmem [#allocation5], %s175
          %s177 = smul.u32 128, %s24
          %s178 = smul.u32 2, %s23
          %s180 = ssub.s32 32768, 32768
          %181 = vsyncadd %s173, %s180
          %s182 = smul.addr %s177, 4
          %s183 = sadd.s32 %s178, %s182
          %s184 = smul.addr %s183, 128
          %s185 = scalar_lea.hbm %s1, %s184
          %s186 = sshll.u32 %s176, 4
          %s187 = int_to_ptr.vmem [resolvable:$true] %s186
          %192 = dma.hbm_to_vmem [thread:$0]  %s185, 32768, %s187, %s173, 512, 256, 16
        $region24: #{tpu_custom_call.1} parent=19 // pred_fallthru
          _
        // Predicated region
        $region25: #{tpu_custom_call.1} parent=19 // pred_check
          %p193 = pneg %p102
        $region26: #{tpu_custom_call.1} parent=19 // pred_check_branch
          %195 = sbr.rel (%p193) target = $region28
        $region27: #{tpu_custom_call.1} parent=19 // pred_region
          %s196 = sand.u32 %s16, 1
          %s197 = scalar_lea.sflag [#allocation6], %s196
          %s198 = sand.u32 %s92, 1
          %s199 = smul.addr %s198, 2
          %s200 = scalar_lea.vmem [#allocation7], %s199
          %s201 = smul.u32 2, %s23
          %s203 = ssub.s32 32, 32
          %204 = vsyncadd %s197, %s203
          %s205 = smul.addr %s201, 16
          %s206 = scalar_lea.hbm %s2, %s205
          %s208 = sshll.u32 %s200, 4
          %s209 = int_to_ptr.vmem [resolvable:$true] %s208
          %211 = dma.hbm_to_vmem [thread:$0]  %s206, 32, %s209, %s197
        $region28: #{tpu_custom_call.1} parent=19 // pred_fallthru
          _
      $region20: #{tpu_custom_call.1} parent=5 // pred_fallthru
        _
      %p212 = scmp.le.s32.totalorder 1, %s16
      %p213 = scmp.lt.s32.totalorder %s16, 3
      %p214 = pnand %p212, %p213
      %p215 = pneg %p214
      // Predicated region
      $region29: #{tpu_custom_call.1} parent=5 // pred_check
        _
      $region30: #{tpu_custom_call.1} parent=5 // pred_check_branch
        %217 = sbr.rel (%p214) target = $region32
      $region31: #{tpu_custom_call.1} parent=5 // pred_region
        %s218 = ssub.s32 %s16, 1
        // Predicated region
        $region33: #{tpu_custom_call.1} parent=31 // pred_check
          %p219 = pneg %p54
        $region34: #{tpu_custom_call.1} parent=31 // pred_check_branch
          %221 = sbr.rel (%p219) target = $region36
        $region35: #{tpu_custom_call.1} parent=31 // pred_region
          %222 = dma.done [#allocation3], 16384
        $region36: #{tpu_custom_call.1} parent=31 // pred_fallthru
          _
        %s223 = sand.u32 %s21, 1
        %s224 = scalar_lea.sflag [#allocation6], %s223
        %s225 = sand.u32 %s69, 1
        %s226 = smul.addr %s225, 2048
        %s227 = scalar_lea.vmem [#allocation5], %s226
        // Predicated region
        $region37: #{tpu_custom_call.1} parent=31 // pred_check
          %p228 = pneg %p82
        $region38: #{tpu_custom_call.1} parent=31 // pred_check_branch
          %230 = sbr.rel (%p228) target = $region40
        $region39: #{tpu_custom_call.1} parent=31 // pred_region
          %231 = dma.done %s224, 32768
        $region40: #{tpu_custom_call.1} parent=31 // pred_fallthru
          _
        %s232 = sand.u32 %s21, 1
        %s233 = scalar_lea.sflag [#allocation6], %s232
        %s234 = sand.u32 %s95, 1
        %s235 = smul.addr %s234, 2
        %s236 = scalar_lea.vmem [#allocation7], %s235
        // Predicated region
        $region41: #{tpu_custom_call.1} parent=31 // pred_check
          %p237 = pneg %p108
        $region42: #{tpu_custom_call.1} parent=31 // pred_check_branch
          %239 = sbr.rel (%p237) target = $region44
        $region43: #{tpu_custom_call.1} parent=31 // pred_region
          %240 = dma.done %s233, 32
        $region44: #{tpu_custom_call.1} parent=31 // pred_fallthru
          _
        %p241 = pneg %p54
        %p242 = pneg %p51
        %s243 = sand.u32 %s21, 1
        %s244 = scalar_lea.sflag [#allocation6], %s243
        %s245 = sand.u32 %s69, 1
        %s246 = smul.addr %s245, 2048
        %s247 = scalar_lea.vmem [#allocation5], %s246
        %p248 = pneg %p82
        %p249 = pneg %p79
        %s250 = sand.u32 %s21, 1
        %s251 = scalar_lea.sflag [#allocation6], %s250
        %s252 = sand.u32 %s95, 1
        %s253 = smul.addr %s252, 2
        %s254 = scalar_lea.vmem [#allocation7], %s253
        %p255 = pneg %p108
        %p256 = pneg %p105
        %p257 = pneg %p134
        %p258 = pneg %p131
        %s259 = sand.u32 %s121, 1
        %s260 = scalar_lea.sflag [#allocation4], %s259
        %s261 = sand.u32 %s121, 1
        %s262 = smul.addr %s261, 256
        %s263 = scalar_lea.vmem [#allocation8], %s262
        %s264 = smul.u32 8, %s26
        %s265 = smul.u32 128, %s26
        %s266 = smul.u32 2, %s25
        %s267 = smul.u32 2, %s25
        %s268 = smul.u32 2, %s25
        %p269 = scmp.eq.s32.totalorder %s26, 0
        // Predicated region
        $region45: #{tpu_custom_call.1} parent=31 // pred_check
          %p270 = pneg %p269
        $region46: #{tpu_custom_call.1} parent=31 // pred_check_branch
          %272 = sbr.rel (%p270) target = $region48
        $region47: #{tpu_custom_call.1} parent=31 // pred_region
          %v273 = vld [vmem:[%s236] sm:$0x3]
          %v275 = vlaneseq
          %v276 = vshrl.u32 %v275, 7
          %v277 = vsub.s32 0, %v276
          %v278 = vrot.slane %v273, %v277
          %v279 = vlaneseq
          %v280 = vshrl.u32 %v279, 7
          %v281 = vsub.s32 1, %v280
          %v282 = vrot.slane %v273, %v281
          %285 = vst [vmem:[%s263] sm:$0xff] %v278
          %286 = vst [vmem:[%s263 + $0x8] sm:$0xff] %v282
          %287 = vst [vmem:[%s263 + $0x10] sm:$0xff] %v278
          %288 = vst [vmem:[%s263 + $0x18] sm:$0xff] %v282
          %289 = vst [vmem:[%s263 + $0x20] sm:$0xff] %v278
          %290 = vst [vmem:[%s263 + $0x28] sm:$0xff] %v282
          %291 = vst [vmem:[%s263 + $0x30] sm:$0xff] %v278
          %292 = vst [vmem:[%s263 + $0x38] sm:$0xff] %v282
          %293 = vst [vmem:[%s263 + $0x40] sm:$0xff] %v278
          %294 = vst [vmem:[%s263 + $0x48] sm:$0xff] %v282
          %295 = vst [vmem:[%s263 + $0x50] sm:$0xff] %v278
          %296 = vst [vmem:[%s263 + $0x58] sm:$0xff] %v282
          %297 = vst [vmem:[%s263 + $0x60] sm:$0xff] %v278
          %298 = vst [vmem:[%s263 + $0x68] sm:$0xff] %v282
          %299 = vst [vmem:[%s263 + $0x70] sm:$0xff] %v278
          %300 = vst [vmem:[%s263 + $0x78] sm:$0xff] %v282
          %301 = vst [vmem:[%s263 + $0x80] sm:$0xff] %v278
          %302 = vst [vmem:[%s263 + $0x88] sm:$0xff] %v282
          %303 = vst [vmem:[%s263 + $0x90] sm:$0xff] %v278
          %304 = vst [vmem:[%s263 + $0x98] sm:$0xff] %v282
          %305 = vst [vmem:[%s263 + $0xa0] sm:$0xff] %v278
          %306 = vst [vmem:[%s263 + $0xa8] sm:$0xff] %v282
          %307 = vst [vmem:[%s263 + $0xb0] sm:$0xff] %v278
          %308 = vst [vmem:[%s263 + $0xb8] sm:$0xff] %v282
          %309 = vst [vmem:[%s263 + $0xc0] sm:$0xff] %v278
          %310 = vst [vmem:[%s263 + $0xc8] sm:$0xff] %v282
          %311 = vst [vmem:[%s263 + $0xd0] sm:$0xff] %v278
          %312 = vst [vmem:[%s263 + $0xd8] sm:$0xff] %v282
          %313 = vst [vmem:[%s263 + $0xe0] sm:$0xff] %v278
          %314 = vst [vmem:[%s263 + $0xe8] sm:$0xff] %v282
          %315 = vst [vmem:[%s263 + $0xf0] sm:$0xff] %v278
          %316 = vst [vmem:[%s263 + $0xf8] sm:$0xff] %v282
        $region48: #{tpu_custom_call.1} parent=31 // pred_fallthru
          _
        %v317 = vld [vmem:[%s263] sm:$0xff]
        %v318 = vld [vmem:[%s263 + $0x8] sm:$0xff]
        %v319 = vld [vmem:[%s263 + $0x10] sm:$0xff]
        %v320 = vld [vmem:[%s263 + $0x18] sm:$0xff]
        %v321 = vld [vmem:[%s263 + $0x20] sm:$0xff]
        %v322 = vld [vmem:[%s263 + $0x28] sm:$0xff]
        %v323 = vld [vmem:[%s263 + $0x30] sm:$0xff]
        %v324 = vld [vmem:[%s263 + $0x38] sm:$0xff]
        %v325 = vld [vmem:[%s263 + $0x40] sm:$0xff]
        %v326 = vld [vmem:[%s263 + $0x48] sm:$0xff]
        %v327 = vld [vmem:[%s263 + $0x50] sm:$0xff]
        %v328 = vld [vmem:[%s263 + $0x58] sm:$0xff]
        %v329 = vld [vmem:[%s263 + $0x60] sm:$0xff]
        %v330 = vld [vmem:[%s263 + $0x68] sm:$0xff]
        %v331 = vld [vmem:[%s263 + $0x70] sm:$0xff]
        %v332 = vld [vmem:[%s263 + $0x78] sm:$0xff]
        %v333 = vld [vmem:[%s263 + $0x80] sm:$0xff]
        %v334 = vld [vmem:[%s263 + $0x88] sm:$0xff]
        %v335 = vld [vmem:[%s263 + $0x90] sm:$0xff]
        %v336 = vld [vmem:[%s263 + $0x98] sm:$0xff]
        %v337 = vld [vmem:[%s263 + $0xa0] sm:$0xff]
        %v338 = vld [vmem:[%s263 + $0xa8] sm:$0xff]
        %v339 = vld [vmem:[%s263 + $0xb0] sm:$0xff]
        %v340 = vld [vmem:[%s263 + $0xb8] sm:$0xff]
        %v341 = vld [vmem:[%s263 + $0xc0] sm:$0xff]
        %v342 = vld [vmem:[%s263 + $0xc8] sm:$0xff]
        %v343 = vld [vmem:[%s263 + $0xd0] sm:$0xff]
        %v344 = vld [vmem:[%s263 + $0xd8] sm:$0xff]
        %v345 = vld [vmem:[%s263 + $0xe0] sm:$0xff]
        %v346 = vld [vmem:[%s263 + $0xe8] sm:$0xff]
        %v347 = vld [vmem:[%s263 + $0xf0] sm:$0xff]
        %v348 = vld [vmem:[%s263 + $0xf8] sm:$0xff]
        %v349 = vld [vmem:[#allocation2] sm:$0xff]
        %v350 = vld [vmem:[#allocation2 + $0x8] sm:$0xff]
        %v351 = vld [vmem:[#allocation2 + $0x10] sm:$0xff]
        %v352 = vld [vmem:[#allocation2 + $0x18] sm:$0xff]
        %v353 = vld [vmem:[#allocation2 + $0x20] sm:$0xff]
        %v354 = vld [vmem:[#allocation2 + $0x28] sm:$0xff]
        %v355 = vld [vmem:[#allocation2 + $0x30] sm:$0xff]
        %v356 = vld [vmem:[#allocation2 + $0x38] sm:$0xff]
        %v357 = vld [vmem:[#allocation2 + $0x40] sm:$0xff]
        %v358 = vld [vmem:[#allocation2 + $0x48] sm:$0xff]
        %v359 = vld [vmem:[#allocation2 + $0x50] sm:$0xff]
        %v360 = vld [vmem:[#allocation2 + $0x58] sm:$0xff]
        %v361 = vld [vmem:[#allocation2 + $0x60] sm:$0xff]
        %v362 = vld [vmem:[#allocation2 + $0x68] sm:$0xff]
        %v363 = vld [vmem:[#allocation2 + $0x70] sm:$0xff]
        %v364 = vld [vmem:[#allocation2 + $0x78] sm:$0xff]
        %v365 = vld [vmem:[#allocation2 + $0x80] sm:$0xff]
        %v366 = vld [vmem:[#allocation2 + $0x88] sm:$0xff]
        %v367 = vld [vmem:[#allocation2 + $0x90] sm:$0xff]
        %v368 = vld [vmem:[#allocation2 + $0x98] sm:$0xff]
        %v369 = vld [vmem:[#allocation2 + $0xa0] sm:$0xff]
        %v370 = vld [vmem:[#allocation2 + $0xa8] sm:$0xff]
        %v371 = vld [vmem:[#allocation2 + $0xb0] sm:$0xff]
        %v372 = vld [vmem:[#allocation2 + $0xb8] sm:$0xff]
        %v373 = vld [vmem:[#allocation2 + $0xc0] sm:$0xff]
        %v374 = vld [vmem:[#allocation2 + $0xc8] sm:$0xff]
        %v375 = vld [vmem:[#allocation2 + $0xd0] sm:$0xff]
        %v376 = vld [vmem:[#allocation2 + $0xd8] sm:$0xff]
        %v377 = vld [vmem:[#allocation2 + $0xe0] sm:$0xff]
        %v378 = vld [vmem:[#allocation2 + $0xe8] sm:$0xff]
        %v379 = vld [vmem:[#allocation2 + $0xf0] sm:$0xff]
        %v380 = vld [vmem:[#allocation2 + $0xf8] sm:$0xff]
        %v381 = vld [vmem:[#allocation2 + $0x100] sm:$0xff]
        %v382 = vld [vmem:[#allocation2 + $0x108] sm:$0xff]
        %v383 = vld [vmem:[#allocation2 + $0x110] sm:$0xff]
        %v384 = vld [vmem:[#allocation2 + $0x118] sm:$0xff]
        %v385 = vld [vmem:[#allocation2 + $0x120] sm:$0xff]
        %v386 = vld [vmem:[#allocation2 + $0x128] sm:$0xff]
        %v387 = vld [vmem:[#allocation2 + $0x130] sm:$0xff]
        %v388 = vld [vmem:[#allocation2 + $0x138] sm:$0xff]
        %v389 = vld [vmem:[#allocation2 + $0x140] sm:$0xff]
        %v390 = vld [vmem:[#allocation2 + $0x148] sm:$0xff]
        %v391 = vld [vmem:[#allocation2 + $0x150] sm:$0xff]
        %v392 = vld [vmem:[#allocation2 + $0x158] sm:$0xff]
        %v393 = vld [vmem:[#allocation2 + $0x160] sm:$0xff]
        %v394 = vld [vmem:[#allocation2 + $0x168] sm:$0xff]
        %v395 = vld [vmem:[#allocation2 + $0x170] sm:$0xff]
        %v396 = vld [vmem:[#allocation2 + $0x178] sm:$0xff]
        %v397 = vld [vmem:[#allocation2 + $0x180] sm:$0xff]
        %v398 = vld [vmem:[#allocation2 + $0x188] sm:$0xff]
        %v399 = vld [vmem:[#allocation2 + $0x190] sm:$0xff]
        %v400 = vld [vmem:[#allocation2 + $0x198] sm:$0xff]
        %v401 = vld [vmem:[#allocation2 + $0x1a0] sm:$0xff]
        %v402 = vld [vmem:[#allocation2 + $0x1a8] sm:$0xff]
        %v403 = vld [vmem:[#allocation2 + $0x1b0] sm:$0xff]
        %v404 = vld [vmem:[#allocation2 + $0x1b8] sm:$0xff]
        %v405 = vld [vmem:[#allocation2 + $0x1c0] sm:$0xff]
        %v406 = vld [vmem:[#allocation2 + $0x1c8] sm:$0xff]
        %v407 = vld [vmem:[#allocation2 + $0x1d0] sm:$0xff]
        %v408 = vld [vmem:[#allocation2 + $0x1d8] sm:$0xff]
        %v409 = vld [vmem:[#allocation2 + $0x1e0] sm:$0xff]
        %v410 = vld [vmem:[#allocation2 + $0x1e8] sm:$0xff]
        %v411 = vld [vmem:[#allocation2 + $0x1f0] sm:$0xff]
        %v412 = vld [vmem:[#allocation2 + $0x1f8] sm:$0xff]
        %v413 = vld [vmem:[#allocation2 + $0x200] sm:$0xff]
        %v414 = vld [vmem:[#allocation2 + $0x208] sm:$0xff]
        %v415 = vld [vmem:[#allocation2 + $0x210] sm:$0xff]
        %v416 = vld [vmem:[#allocation2 + $0x218] sm:$0xff]
        %v417 = vld [vmem:[#allocation2 + $0x220] sm:$0xff]
        %v418 = vld [vmem:[#allocation2 + $0x228] sm:$0xff]
        %v419 = vld [vmem:[#allocation2 + $0x230] sm:$0xff]
        %v420 = vld [vmem:[#allocation2 + $0x238] sm:$0xff]
        %v421 = vld [vmem:[#allocation2 + $0x240] sm:$0xff]
        %v422 = vld [vmem:[#allocation2 + $0x248] sm:$0xff]
        %v423 = vld [vmem:[#allocation2 + $0x250] sm:$0xff]
        %v424 = vld [vmem:[#allocation2 + $0x258] sm:$0xff]
        %v425 = vld [vmem:[#allocation2 + $0x260] sm:$0xff]
        %v426 = vld [vmem:[#allocation2 + $0x268] sm:$0xff]
        %v427 = vld [vmem:[#allocation2 + $0x270] sm:$0xff]
        %v428 = vld [vmem:[#allocation2 + $0x278] sm:$0xff]
        %v429 = vld [vmem:[#allocation2 + $0x280] sm:$0xff]
        %v430 = vld [vmem:[#allocation2 + $0x288] sm:$0xff]
        %v431 = vld [vmem:[#allocation2 + $0x290] sm:$0xff]
        %v432 = vld [vmem:[#allocation2 + $0x298] sm:$0xff]
        %v433 = vld [vmem:[#allocation2 + $0x2a0] sm:$0xff]
        %v434 = vld [vmem:[#allocation2 + $0x2a8] sm:$0xff]
        %v435 = vld [vmem:[#allocation2 + $0x2b0] sm:$0xff]
        %v436 = vld [vmem:[#allocation2 + $0x2b8] sm:$0xff]
        %v437 = vld [vmem:[#allocation2 + $0x2c0] sm:$0xff]
        %v438 = vld [vmem:[#allocation2 + $0x2c8] sm:$0xff]
        %v439 = vld [vmem:[#allocation2 + $0x2d0] sm:$0xff]
        %v440 = vld [vmem:[#allocation2 + $0x2d8] sm:$0xff]
        %v441 = vld [vmem:[#allocation2 + $0x2e0] sm:$0xff]
        %v442 = vld [vmem:[#allocation2 + $0x2e8] sm:$0xff]
        %v443 = vld [vmem:[#allocation2 + $0x2f0] sm:$0xff]
        %v444 = vld [vmem:[#allocation2 + $0x2f8] sm:$0xff]
        %v445 = vld [vmem:[#allocation2 + $0x300] sm:$0xff]
        %v446 = vld [vmem:[#allocation2 + $0x308] sm:$0xff]
        %v447 = vld [vmem:[#allocation2 + $0x310] sm:$0xff]
        %v448 = vld [vmem:[#allocation2 + $0x318] sm:$0xff]
        %v449 = vld [vmem:[#allocation2 + $0x320] sm:$0xff]
        %v450 = vld [vmem:[#allocation2 + $0x328] sm:$0xff]
        %v451 = vld [vmem:[#allocation2 + $0x330] sm:$0xff]
        %v452 = vld [vmem:[#allocation2 + $0x338] sm:$0xff]
        %v453 = vld [vmem:[#allocation2 + $0x340] sm:$0xff]
        %v454 = vld [vmem:[#allocation2 + $0x348] sm:$0xff]
        %v455 = vld [vmem:[#allocation2 + $0x350] sm:$0xff]
        %v456 = vld [vmem:[#allocation2 + $0x358] sm:$0xff]
        %v457 = vld [vmem:[#allocation2 + $0x360] sm:$0xff]
        %v458 = vld [vmem:[#allocation2 + $0x368] sm:$0xff]
        %v459 = vld [vmem:[#allocation2 + $0x370] sm:$0xff]
        %v460 = vld [vmem:[#allocation2 + $0x378] sm:$0xff]
        %v461 = vld [vmem:[#allocation2 + $0x380] sm:$0xff]
        %v462 = vld [vmem:[#allocation2 + $0x388] sm:$0xff]
        %v463 = vld [vmem:[#allocation2 + $0x390] sm:$0xff]
        %v464 = vld [vmem:[#allocation2 + $0x398] sm:$0xff]
        %v465 = vld [vmem:[#allocation2 + $0x3a0] sm:$0xff]
        %v466 = vld [vmem:[#allocation2 + $0x3a8] sm:$0xff]
        %v467 = vld [vmem:[#allocation2 + $0x3b0] sm:$0xff]
        %v468 = vld [vmem:[#allocation2 + $0x3b8] sm:$0xff]
        %v469 = vld [vmem:[#allocation2 + $0x3c0] sm:$0xff]
        %v470 = vld [vmem:[#allocation2 + $0x3c8] sm:$0xff]
        %v471 = vld [vmem:[#allocation2 + $0x3d0] sm:$0xff]
        %v472 = vld [vmem:[#allocation2 + $0x3d8] sm:$0xff]
        %v473 = vld [vmem:[#allocation2 + $0x3e0] sm:$0xff]
        %v474 = vld [vmem:[#allocation2 + $0x3e8] sm:$0xff]
        %v475 = vld [vmem:[#allocation2 + $0x3f0] sm:$0xff]
        %v476 = vld [vmem:[#allocation2 + $0x3f8] sm:$0xff]
        %v477 = vld [vmem:[%s227] sm:$0xff]
        %v478 = vld [vmem:[%s227 + $0x8] sm:$0xff]
        %v479 = vld [vmem:[%s227 + $0x10] sm:$0xff]
        %v480 = vld [vmem:[%s227 + $0x18] sm:$0xff]
        %v481 = vld [vmem:[%s227 + $0x20] sm:$0xff]
        %v482 = vld [vmem:[%s227 + $0x28] sm:$0xff]
        %v483 = vld [vmem:[%s227 + $0x30] sm:$0xff]
        %v484 = vld [vmem:[%s227 + $0x38] sm:$0xff]
        %v485 = vld [vmem:[%s227 + $0x40] sm:$0xff]
        %v486 = vld [vmem:[%s227 + $0x48] sm:$0xff]
        %v487 = vld [vmem:[%s227 + $0x50] sm:$0xff]
        %v488 = vld [vmem:[%s227 + $0x58] sm:$0xff]
        %v489 = vld [vmem:[%s227 + $0x60] sm:$0xff]
        %v490 = vld [vmem:[%s227 + $0x68] sm:$0xff]
        %v491 = vld [vmem:[%s227 + $0x70] sm:$0xff]
        %v492 = vld [vmem:[%s227 + $0x78] sm:$0xff]
        %v493 = vld [vmem:[%s227 + $0x80] sm:$0xff]
        %v494 = vld [vmem:[%s227 + $0x88] sm:$0xff]
        %v495 = vld [vmem:[%s227 + $0x90] sm:$0xff]
        %v496 = vld [vmem:[%s227 + $0x98] sm:$0xff]
        %v497 = vld [vmem:[%s227 + $0xa0] sm:$0xff]
        %v498 = vld [vmem:[%s227 + $0xa8] sm:$0xff]
        %v499 = vld [vmem:[%s227 + $0xb0] sm:$0xff]
        %v500 = vld [vmem:[%s227 + $0xb8] sm:$0xff]
        %v501 = vld [vmem:[%s227 + $0xc0] sm:$0xff]
        %v502 = vld [vmem:[%s227 + $0xc8] sm:$0xff]
        %v503 = vld [vmem:[%s227 + $0xd0] sm:$0xff]
        %v504 = vld [vmem:[%s227 + $0xd8] sm:$0xff]
        %v505 = vld [vmem:[%s227 + $0xe0] sm:$0xff]
        %v506 = vld [vmem:[%s227 + $0xe8] sm:$0xff]
        %v507 = vld [vmem:[%s227 + $0xf0] sm:$0xff]
        %v508 = vld [vmem:[%s227 + $0xf8] sm:$0xff]
        %v509 = vld [vmem:[%s227 + $0x100] sm:$0xff]
        %v510 = vld [vmem:[%s227 + $0x108] sm:$0xff]
        %v511 = vld [vmem:[%s227 + $0x110] sm:$0xff]
        %v512 = vld [vmem:[%s227 + $0x118] sm:$0xff]
        %v513 = vld [vmem:[%s227 + $0x120] sm:$0xff]
        %v514 = vld [vmem:[%s227 + $0x128] sm:$0xff]
        %v515 = vld [vmem:[%s227 + $0x130] sm:$0xff]
        %v516 = vld [vmem:[%s227 + $0x138] sm:$0xff]
        %v517 = vld [vmem:[%s227 + $0x140] sm:$0xff]
        %v518 = vld [vmem:[%s227 + $0x148] sm:$0xff]
        %v519 = vld [vmem:[%s227 + $0x150] sm:$0xff]
        %v520 = vld [vmem:[%s227 + $0x158] sm:$0xff]
        %v521 = vld [vmem:[%s227 + $0x160] sm:$0xff]
        %v522 = vld [vmem:[%s227 + $0x168] sm:$0xff]
        %v523 = vld [vmem:[%s227 + $0x170] sm:$0xff]
        %v524 = vld [vmem:[%s227 + $0x178] sm:$0xff]
        %v525 = vld [vmem:[%s227 + $0x180] sm:$0xff]
        %v526 = vld [vmem:[%s227 + $0x188] sm:$0xff]
        %v527 = vld [vmem:[%s227 + $0x190] sm:$0xff]
        %v528 = vld [vmem:[%s227 + $0x198] sm:$0xff]
        %v529 = vld [vmem:[%s227 + $0x1a0] sm:$0xff]
        %v530 = vld [vmem:[%s227 + $0x1a8] sm:$0xff]
        %v531 = vld [vmem:[%s227 + $0x1b0] sm:$0xff]
        %v532 = vld [vmem:[%s227 + $0x1b8] sm:$0xff]
        %v533 = vld [vmem:[%s227 + $0x1c0] sm:$0xff]
        %v534 = vld [vmem:[%s227 + $0x1c8] sm:$0xff]
        %v535 = vld [vmem:[%s227 + $0x1d0] sm:$0xff]
        %v536 = vld [vmem:[%s227 + $0x1d8] sm:$0xff]
        %v537 = vld [vmem:[%s227 + $0x1e0] sm:$0xff]
        %v538 = vld [vmem:[%s227 + $0x1e8] sm:$0xff]
        %v539 = vld [vmem:[%s227 + $0x1f0] sm:$0xff]
        %v540 = vld [vmem:[%s227 + $0x1f8] sm:$0xff]
        %v541 = vld [vmem:[%s227 + $0x200] sm:$0xff]
        %v542 = vld [vmem:[%s227 + $0x208] sm:$0xff]
        %v543 = vld [vmem:[%s227 + $0x210] sm:$0xff]
        %v544 = vld [vmem:[%s227 + $0x218] sm:$0xff]
        %v545 = vld [vmem:[%s227 + $0x220] sm:$0xff]
        %v546 = vld [vmem:[%s227 + $0x228] sm:$0xff]
        %v547 = vld [vmem:[%s227 + $0x230] sm:$0xff]
        %v548 = vld [vmem:[%s227 + $0x238] sm:$0xff]
        %v549 = vld [vmem:[%s227 + $0x240] sm:$0xff]
        %v550 = vld [vmem:[%s227 + $0x248] sm:$0xff]
        %v551 = vld [vmem:[%s227 + $0x250] sm:$0xff]
        %v552 = vld [vmem:[%s227 + $0x258] sm:$0xff]
        %v553 = vld [vmem:[%s227 + $0x260] sm:$0xff]
        %v554 = vld [vmem:[%s227 + $0x268] sm:$0xff]
        %v555 = vld [vmem:[%s227 + $0x270] sm:$0xff]
        %v556 = vld [vmem:[%s227 + $0x278] sm:$0xff]
        %v557 = vld [vmem:[%s227 + $0x280] sm:$0xff]
        %v558 = vld [vmem:[%s227 + $0x288] sm:$0xff]
        %v559 = vld [vmem:[%s227 + $0x290] sm:$0xff]
        %v560 = vld [vmem:[%s227 + $0x298] sm:$0xff]
        %v561 = vld [vmem:[%s227 + $0x2a0] sm:$0xff]
        %v562 = vld [vmem:[%s227 + $0x2a8] sm:$0xff]
        %v563 = vld [vmem:[%s227 + $0x2b0] sm:$0xff]
        %v564 = vld [vmem:[%s227 + $0x2b8] sm:$0xff]
        %v565 = vld [vmem:[%s227 + $0x2c0] sm:$0xff]
        %v566 = vld [vmem:[%s227 + $0x2c8] sm:$0xff]
        %v567 = vld [vmem:[%s227 + $0x2d0] sm:$0xff]
        %v568 = vld [vmem:[%s227 + $0x2d8] sm:$0xff]
        %v569 = vld [vmem:[%s227 + $0x2e0] sm:$0xff]
        %v570 = vld [vmem:[%s227 + $0x2e8] sm:$0xff]
        %v571 = vld [vmem:[%s227 + $0x2f0] sm:$0xff]
        %v572 = vld [vmem:[%s227 + $0x2f8] sm:$0xff]
        %v573 = vld [vmem:[%s227 + $0x300] sm:$0xff]
        %v574 = vld [vmem:[%s227 + $0x308] sm:$0xff]
        %v575 = vld [vmem:[%s227 + $0x310] sm:$0xff]
        %v576 = vld [vmem:[%s227 + $0x318] sm:$0xff]
        %v577 = vld [vmem:[%s227 + $0x320] sm:$0xff]
        %v578 = vld [vmem:[%s227 + $0x328] sm:$0xff]
        %v579 = vld [vmem:[%s227 + $0x330] sm:$0xff]
        %v580 = vld [vmem:[%s227 + $0x338] sm:$0xff]
        %v581 = vld [vmem:[%s227 + $0x340] sm:$0xff]
        %v582 = vld [vmem:[%s227 + $0x348] sm:$0xff]
        %v583 = vld [vmem:[%s227 + $0x350] sm:$0xff]
        %v584 = vld [vmem:[%s227 + $0x358] sm:$0xff]
        %v585 = vld [vmem:[%s227 + $0x360] sm:$0xff]
        %v586 = vld [vmem:[%s227 + $0x368] sm:$0xff]
        %v587 = vld [vmem:[%s227 + $0x370] sm:$0xff]
        %v588 = vld [vmem:[%s227 + $0x378] sm:$0xff]
        %v589 = vld [vmem:[%s227 + $0x380] sm:$0xff]
        %v590 = vld [vmem:[%s227 + $0x388] sm:$0xff]
        %v591 = vld [vmem:[%s227 + $0x390] sm:$0xff]
        %v592 = vld [vmem:[%s227 + $0x398] sm:$0xff]
        %v593 = vld [vmem:[%s227 + $0x3a0] sm:$0xff]
        %v594 = vld [vmem:[%s227 + $0x3a8] sm:$0xff]
        %v595 = vld [vmem:[%s227 + $0x3b0] sm:$0xff]
        %v596 = vld [vmem:[%s227 + $0x3b8] sm:$0xff]
        %v597 = vld [vmem:[%s227 + $0x3c0] sm:$0xff]
        %v598 = vld [vmem:[%s227 + $0x3c8] sm:$0xff]
        %v599 = vld [vmem:[%s227 + $0x3d0] sm:$0xff]
        %v600 = vld [vmem:[%s227 + $0x3d8] sm:$0xff]
        %v601 = vld [vmem:[%s227 + $0x3e0] sm:$0xff]
        %v602 = vld [vmem:[%s227 + $0x3e8] sm:$0xff]
        %v603 = vld [vmem:[%s227 + $0x3f0] sm:$0xff]
        %v604 = vld [vmem:[%s227 + $0x3f8] sm:$0xff]
        %v605 = vld [vmem:[%s227 + $0x400] sm:$0xff]
        %v606 = vld [vmem:[%s227 + $0x408] sm:$0xff]
        %v607 = vld [vmem:[%s227 + $0x410] sm:$0xff]
        %v608 = vld [vmem:[%s227 + $0x418] sm:$0xff]
        %v609 = vld [vmem:[%s227 + $0x420] sm:$0xff]
        %v610 = vld [vmem:[%s227 + $0x428] sm:$0xff]
        %v611 = vld [vmem:[%s227 + $0x430] sm:$0xff]
        %v612 = vld [vmem:[%s227 + $0x438] sm:$0xff]
        %v613 = vld [vmem:[%s227 + $0x440] sm:$0xff]
        %v614 = vld [vmem:[%s227 + $0x448] sm:$0xff]
        %v615 = vld [vmem:[%s227 + $0x450] sm:$0xff]
        %v616 = vld [vmem:[%s227 + $0x458] sm:$0xff]
        %v617 = vld [vmem:[%s227 + $0x460] sm:$0xff]
        %v618 = vld [vmem:[%s227 + $0x468] sm:$0xff]
        %v619 = vld [vmem:[%s227 + $0x470] sm:$0xff]
        %v620 = vld [vmem:[%s227 + $0x478] sm:$0xff]
        %v621 = vld [vmem:[%s227 + $0x480] sm:$0xff]
        %v622 = vld [vmem:[%s227 + $0x488] sm:$0xff]
        %v623 = vld [vmem:[%s227 + $0x490] sm:$0xff]
        %v624 = vld [vmem:[%s227 + $0x498] sm:$0xff]
        %v625 = vld [vmem:[%s227 + $0x4a0] sm:$0xff]
        %v626 = vld [vmem:[%s227 + $0x4a8] sm:$0xff]
        %v627 = vld [vmem:[%s227 + $0x4b0] sm:$0xff]
        %v628 = vld [vmem:[%s227 + $0x4b8] sm:$0xff]
        %v629 = vld [vmem:[%s227 + $0x4c0] sm:$0xff]
        %v630 = vld [vmem:[%s227 + $0x4c8] sm:$0xff]
        %v631 = vld [vmem:[%s227 + $0x4d0] sm:$0xff]
        %v632 = vld [vmem:[%s227 + $0x4d8] sm:$0xff]
        %v633 = vld [vmem:[%s227 + $0x4e0] sm:$0xff]
        %v634 = vld [vmem:[%s227 + $0x4e8] sm:$0xff]
        %v635 = vld [vmem:[%s227 + $0x4f0] sm:$0xff]
        %v636 = vld [vmem:[%s227 + $0x4f8] sm:$0xff]
        %v637 = vld [vmem:[%s227 + $0x500] sm:$0xff]
        %v638 = vld [vmem:[%s227 + $0x508] sm:$0xff]
        %v639 = vld [vmem:[%s227 + $0x510] sm:$0xff]
        %v640 = vld [vmem:[%s227 + $0x518] sm:$0xff]
        %v641 = vld [vmem:[%s227 + $0x520] sm:$0xff]
        %v642 = vld [vmem:[%s227 + $0x528] sm:$0xff]
        %v643 = vld [vmem:[%s227 + $0x530] sm:$0xff]
        %v644 = vld [vmem:[%s227 + $0x538] sm:$0xff]
        %v645 = vld [vmem:[%s227 + $0x540] sm:$0xff]
        %v646 = vld [vmem:[%s227 + $0x548] sm:$0xff]
        %v647 = vld [vmem:[%s227 + $0x550] sm:$0xff]
        %v648 = vld [vmem:[%s227 + $0x558] sm:$0xff]
        %v649 = vld [vmem:[%s227 + $0x560] sm:$0xff]
        %v650 = vld [vmem:[%s227 + $0x568] sm:$0xff]
        %v651 = vld [vmem:[%s227 + $0x570] sm:$0xff]
        %v652 = vld [vmem:[%s227 + $0x578] sm:$0xff]
        %v653 = vld [vmem:[%s227 + $0x580] sm:$0xff]
        %v654 = vld [vmem:[%s227 + $0x588] sm:$0xff]
        %v655 = vld [vmem:[%s227 + $0x590] sm:$0xff]
        %v656 = vld [vmem:[%s227 + $0x598] sm:$0xff]
        %v657 = vld [vmem:[%s227 + $0x5a0] sm:$0xff]
        %v658 = vld [vmem:[%s227 + $0x5a8] sm:$0xff]
        %v659 = vld [vmem:[%s227 + $0x5b0] sm:$0xff]
        %v660 = vld [vmem:[%s227 + $0x5b8] sm:$0xff]
        %v661 = vld [vmem:[%s227 + $0x5c0] sm:$0xff]
        %v662 = vld [vmem:[%s227 + $0x5c8] sm:$0xff]
        %v663 = vld [vmem:[%s227 + $0x5d0] sm:$0xff]
        %v664 = vld [vmem:[%s227 + $0x5d8] sm:$0xff]
        %v665 = vld [vmem:[%s227 + $0x5e0] sm:$0xff]
        %v666 = vld [vmem:[%s227 + $0x5e8] sm:$0xff]
        %v667 = vld [vmem:[%s227 + $0x5f0] sm:$0xff]
        %v668 = vld [vmem:[%s227 + $0x5f8] sm:$0xff]
        %v669 = vld [vmem:[%s227 + $0x600] sm:$0xff]
        %v670 = vld [vmem:[%s227 + $0x608] sm:$0xff]
        %v671 = vld [vmem:[%s227 + $0x610] sm:$0xff]
        %v672 = vld [vmem:[%s227 + $0x618] sm:$0xff]
        %v673 = vld [vmem:[%s227 + $0x620] sm:$0xff]
        %v674 = vld [vmem:[%s227 + $0x628] sm:$0xff]
        %v675 = vld [vmem:[%s227 + $0x630] sm:$0xff]
        %v676 = vld [vmem:[%s227 + $0x638] sm:$0xff]
        %v677 = vld [vmem:[%s227 + $0x640] sm:$0xff]
        %v678 = vld [vmem:[%s227 + $0x648] sm:$0xff]
        %v679 = vld [vmem:[%s227 + $0x650] sm:$0xff]
        %v680 = vld [vmem:[%s227 + $0x658] sm:$0xff]
        %v681 = vld [vmem:[%s227 + $0x660] sm:$0xff]
        %v682 = vld [vmem:[%s227 + $0x668] sm:$0xff]
        %v683 = vld [vmem:[%s227 + $0x670] sm:$0xff]
        %v684 = vld [vmem:[%s227 + $0x678] sm:$0xff]
        %v685 = vld [vmem:[%s227 + $0x680] sm:$0xff]
        %v686 = vld [vmem:[%s227 + $0x688] sm:$0xff]
        %v687 = vld [vmem:[%s227 + $0x690] sm:$0xff]
        %v688 = vld [vmem:[%s227 + $0x698] sm:$0xff]
        %v689 = vld [vmem:[%s227 + $0x6a0] sm:$0xff]
        %v690 = vld [vmem:[%s227 + $0x6a8] sm:$0xff]
        %v691 = vld [vmem:[%s227 + $0x6b0] sm:$0xff]
        %v692 = vld [vmem:[%s227 + $0x6b8] sm:$0xff]
        %v693 = vld [vmem:[%s227 + $0x6c0] sm:$0xff]
        %v694 = vld [vmem:[%s227 + $0x6c8] sm:$0xff]
        %v695 = vld [vmem:[%s227 + $0x6d0] sm:$0xff]
        %v696 = vld [vmem:[%s227 + $0x6d8] sm:$0xff]
        %v697 = vld [vmem:[%s227 + $0x6e0] sm:$0xff]
        %v698 = vld [vmem:[%s227 + $0x6e8] sm:$0xff]
        %v699 = vld [vmem:[%s227 + $0x6f0] sm:$0xff]
        %v700 = vld [vmem:[%s227 + $0x6f8] sm:$0xff]
        %v701 = vld [vmem:[%s227 + $0x700] sm:$0xff]
        %v702 = vld [vmem:[%s227 + $0x708] sm:$0xff]
        %v703 = vld [vmem:[%s227 + $0x710] sm:$0xff]
        %v704 = vld [vmem:[%s227 + $0x718] sm:$0xff]
        %v705 = vld [vmem:[%s227 + $0x720] sm:$0xff]
        %v706 = vld [vmem:[%s227 + $0x728] sm:$0xff]
        %v707 = vld [vmem:[%s227 + $0x730] sm:$0xff]
        %v708 = vld [vmem:[%s227 + $0x738] sm:$0xff]
        %v709 = vld [vmem:[%s227 + $0x740] sm:$0xff]
        %v710 = vld [vmem:[%s227 + $0x748] sm:$0xff]
        %v711 = vld [vmem:[%s227 + $0x750] sm:$0xff]
        %v712 = vld [vmem:[%s227 + $0x758] sm:$0xff]
        %v713 = vld [vmem:[%s227 + $0x760] sm:$0xff]
        %v714 = vld [vmem:[%s227 + $0x768] sm:$0xff]
        %v715 = vld [vmem:[%s227 + $0x770] sm:$0xff]
        %v716 = vld [vmem:[%s227 + $0x778] sm:$0xff]
        %v717 = vld [vmem:[%s227 + $0x780] sm:$0xff]
        %v718 = vld [vmem:[%s227 + $0x788] sm:$0xff]
        %v719 = vld [vmem:[%s227 + $0x790] sm:$0xff]
        %v720 = vld [vmem:[%s227 + $0x798] sm:$0xff]
        %v721 = vld [vmem:[%s227 + $0x7a0] sm:$0xff]
        %v722 = vld [vmem:[%s227 + $0x7a8] sm:$0xff]
        %v723 = vld [vmem:[%s227 + $0x7b0] sm:$0xff]
        %v724 = vld [vmem:[%s227 + $0x7b8] sm:$0xff]
        %v725 = vld [vmem:[%s227 + $0x7c0] sm:$0xff]
        %v726 = vld [vmem:[%s227 + $0x7c8] sm:$0xff]
        %v727 = vld [vmem:[%s227 + $0x7d0] sm:$0xff]
        %v728 = vld [vmem:[%s227 + $0x7d8] sm:$0xff]
        %v729 = vld [vmem:[%s227 + $0x7e0] sm:$0xff]
        %v730 = vld [vmem:[%s227 + $0x7e8] sm:$0xff]
        %v731 = vld [vmem:[%s227 + $0x7f0] sm:$0xff]
        %v732 = vld [vmem:[%s227 + $0x7f8] sm:$0xff]
        %733 = vmatprep.subr.mxu0 %v508
        %734 = vmatpush1.msra.mxu0 %v507
        %735 = vmatprep.subr.mxu0 %v506
        %736 = vmatpush1.msra.mxu0 %v505
        %737 = vmatprep.subr.mxu0 %v504
        %738 = vmatpush1.msra.mxu0 %v503
        %739 = vmatprep.subr.mxu0 %v502
        %740 = vmatpush1.msra.mxu0 %v501
        %741 = vmatprep.subr.mxu0 %v500
        %742 = vmatpush1.msra.mxu0 %v499
        %743 = vmatprep.subr.mxu0 %v498
        %744 = vmatpush1.msra.mxu0 %v497
        %745 = vmatprep.subr.mxu0 %v496
        %746 = vmatpush1.msra.mxu0 %v495
        %747 = vmatprep.subr.mxu0 %v494
        %748 = vmatpush1.msra.mxu0 %v493
        %749 = vmatprep.subr.mxu0 %v492
        %750 = vmatpush1.msra.mxu0 %v491
        %751 = vmatprep.subr.mxu0 %v490
        %752 = vmatpush1.msra.mxu0 %v489
        %753 = vmatprep.subr.mxu0 %v488
        %754 = vmatpush1.msra.mxu0 %v487
        %755 = vmatprep.subr.mxu0 %v486
        %756 = vmatpush1.msra.mxu0 %v485
        %757 = vmatprep.subr.mxu0 %v484
        %758 = vmatpush1.msra.mxu0 %v483
        %759 = vmatprep.subr.mxu0 %v482
        %760 = vmatpush1.msra.mxu0 %v481
        %761 = vmatprep.subr.mxu0 %v480
        %762 = vmatpush1.msra.mxu0 %v479
        %763 = vmatprep.subr.mxu0 %v478
        %764 = vmatpush1.msra.mxu0 %v477
        %765 = vmatprep.subr.mxu0 %v540
        %766 = vmatpush2.msra.mxu0 %v539
        %767 = vmatprep.subr.mxu0 %v538
        %768 = vmatpush2.msra.mxu0 %v537
        %769 = vmatprep.subr.mxu0 %v536
        %770 = vmatpush2.msra.mxu0 %v535
        %771 = vmatprep.subr.mxu0 %v534
        %772 = vmatpush2.msra.mxu0 %v533
        %773 = vmatprep.subr.mxu0 %v532
        %774 = vmatpush2.msra.mxu0 %v531
        %775 = vmatprep.subr.mxu0 %v530
        %776 = vmatpush2.msra.mxu0 %v529
        %777 = vmatprep.subr.mxu0 %v528
        %778 = vmatpush2.msra.mxu0 %v527
        %779 = vmatprep.subr.mxu0 %v526
        %780 = vmatpush2.msra.mxu0 %v525
        %781 = vmatprep.subr.mxu0 %v524
        %782 = vmatpush2.msra.mxu0 %v523
        %783 = vmatprep.subr.mxu0 %v522
        %784 = vmatpush2.msra.mxu0 %v521
        %785 = vmatprep.subr.mxu0 %v520
        %786 = vmatpush2.msra.mxu0 %v519
        %787 = vmatprep.subr.mxu0 %v518
        %788 = vmatpush2.msra.mxu0 %v517
        %789 = vmatprep.subr.mxu0 %v516
        %790 = vmatpush2.msra.mxu0 %v515
        %791 = vmatprep.subr.mxu0 %v514
        %792 = vmatpush2.msra.mxu0 %v513
        %793 = vmatprep.subr.mxu0 %v512
        %794 = vmatpush2.msra.mxu0 %v511
        %795 = vmatprep.subr.mxu0 %v510
        %796 = vmatpush2.msra.mxu0 %v509
        %797 = vmatprep.mubr.f32.mxu0 %v350
        %798 = vmatmul.mubr.f32.gmra.mxu0 %v349
        %v799 = vpop.f32.mrf.mxu0
        %v800 = vadd.f32 0.0, %v799
        %v801 = vpop.f32.mrf.mxu0
        %v802 = vadd.f32 0.0, %v801
        %803 = vmatprep.mubr.f32.mxu0 %v358
        %804 = vmatmul.mubr.f32.gmra.mxu0 %v357
        %v805 = vpop.f32.mrf.mxu0
        %v806 = vadd.f32 0.0, %v805
        %v807 = vpop.f32.mrf.mxu0
        %v808 = vadd.f32 0.0, %v807
        %809 = vmatprep.mubr.f32.mxu0 %v366
        %810 = vmatmul.mubr.f32.gmra.mxu0 %v365
        %v811 = vpop.f32.mrf.mxu0
        %v812 = vadd.f32 0.0, %v811
        %v813 = vpop.f32.mrf.mxu0
        %v814 = vadd.f32 0.0, %v813
        %815 = vmatprep.mubr.f32.mxu0 %v374
        %816 = vmatmul.mubr.f32.gmra.mxu0 %v373
        %v817 = vpop.f32.mrf.mxu0
        %v818 = vadd.f32 0.0, %v817
        %v819 = vpop.f32.mrf.mxu0
        %v820 = vadd.f32 0.0, %v819
        %821 = vmatprep.mubr.f32.mxu0 %v382
        %822 = vmatmul.mubr.f32.gmra.mxu0 %v381
        %v823 = vpop.f32.mrf.mxu0
        %v824 = vadd.f32 0.0, %v823
        %v825 = vpop.f32.mrf.mxu0
        %v826 = vadd.f32 0.0, %v825
        %827 = vmatprep.mubr.f32.mxu0 %v390
        %828 = vmatmul.mubr.f32.gmra.mxu0 %v389
        %v829 = vpop.f32.mrf.mxu0
        %v830 = vadd.f32 0.0, %v829
        %v831 = vpop.f32.mrf.mxu0
        %v832 = vadd.f32 0.0, %v831
        %833 = vmatprep.mubr.f32.mxu0 %v398
        %834 = vmatmul.mubr.f32.gmra.mxu0 %v397
        %v835 = vpop.f32.mrf.mxu0
        %v836 = vadd.f32 0.0, %v835
        %v837 = vpop.f32.mrf.mxu0
        %v838 = vadd.f32 0.0, %v837
        %839 = vmatprep.mubr.f32.mxu0 %v406
        %840 = vmatmul.mubr.f32.gmra.mxu0 %v405
        %v841 = vpop.f32.mrf.mxu0
        %v842 = vadd.f32 0.0, %v841
        %v843 = vpop.f32.mrf.mxu0
        %v844 = vadd.f32 0.0, %v843
        %845 = vmatprep.mubr.f32.mxu0 %v414
        %846 = vmatmul.mubr.f32.gmra.mxu0 %v413
        %v847 = vpop.f32.mrf.mxu0
        %v848 = vadd.f32 0.0, %v847
        %v849 = vpop.f32.mrf.mxu0
        %v850 = vadd.f32 0.0, %v849
        %851 = vmatprep.mubr.f32.mxu0 %v422
        %852 = vmatmul.mubr.f32.gmra.mxu0 %v421
        %v853 = vpop.f32.mrf.mxu0
        %v854 = vadd.f32 0.0, %v853
        %v855 = vpop.f32.mrf.mxu0
        %v856 = vadd.f32 0.0, %v855
        %857 = vmatprep.mubr.f32.mxu0 %v430
        %858 = vmatmul.mubr.f32.gmra.mxu0 %v429
        %v859 = vpop.f32.mrf.mxu0
        %v860 = vadd.f32 0.0, %v859
        %v861 = vpop.f32.mrf.mxu0
        %v862 = vadd.f32 0.0, %v861
        %863 = vmatprep.mubr.f32.mxu0 %v438
        %864 = vmatmul.mubr.f32.gmra.mxu0 %v437
        %v865 = vpop.f32.mrf.mxu0
        %v866 = vadd.f32 0.0, %v865
        %v867 = vpop.f32.mrf.mxu0
        %v868 = vadd.f32 0.0, %v867
        %869 = vmatprep.mubr.f32.mxu0 %v446
        %870 = vmatmul.mubr.f32.gmra.mxu0 %v445
        %v871 = vpop.f32.mrf.mxu0
        %v872 = vadd.f32 0.0, %v871
        %v873 = vpop.f32.mrf.mxu0
        %v874 = vadd.f32 0.0, %v873
        %875 = vmatprep.mubr.f32.mxu0 %v454
        %876 = vmatmul.mubr.f32.gmra.mxu0 %v453
        %v877 = vpop.f32.mrf.mxu0
        %v878 = vadd.f32 0.0, %v877
        %v879 = vpop.f32.mrf.mxu0
        %v880 = vadd.f32 0.0, %v879
        %881 = vmatprep.mubr.f32.mxu0 %v462
        %882 = vmatmul.mubr.f32.gmra.mxu0 %v461
        %v883 = vpop.f32.mrf.mxu0
        %v884 = vadd.f32 0.0, %v883
        %v885 = vpop.f32.mrf.mxu0
        %v886 = vadd.f32 0.0, %v885
        %887 = vmatprep.mubr.f32.mxu0 %v470
        %888 = vmatmul.mubr.f32.gmra.mxu0 %v469
        %v889 = vpop.f32.mrf.mxu0
        %v890 = vadd.f32 0.0, %v889
        %v891 = vpop.f32.mrf.mxu0
        %v892 = vadd.f32 0.0, %v891
        %893 = vdwg.mxu0
        %894 = vmatprep.subr.mxu0 %v572
        %895 = vmatpush1.msra.mxu0 %v571
        %896 = vmatprep.subr.mxu0 %v570
        %897 = vmatpush1.msra.mxu0 %v569
        %898 = vmatprep.subr.mxu0 %v568
        %899 = vmatpush1.msra.mxu0 %v567
        %900 = vmatprep.subr.mxu0 %v566
        %901 = vmatpush1.msra.mxu0 %v565
        %902 = vmatprep.subr.mxu0 %v564
        %903 = vmatpush1.msra.mxu0 %v563
        %904 = vmatprep.subr.mxu0 %v562
        %905 = vmatpush1.msra.mxu0 %v561
        %906 = vmatprep.subr.mxu0 %v560
        %907 = vmatpush1.msra.mxu0 %v559
        %908 = vmatprep.subr.mxu0 %v558
        %909 = vmatpush1.msra.mxu0 %v557
        %910 = vmatprep.subr.mxu0 %v556
        %911 = vmatpush1.msra.mxu0 %v555
        %912 = vmatprep.subr.mxu0 %v554
        %913 = vmatpush1.msra.mxu0 %v553
        %914 = vmatprep.subr.mxu0 %v552
        %915 = vmatpush1.msra.mxu0 %v551
        %916 = vmatprep.subr.mxu0 %v550
        %917 = vmatpush1.msra.mxu0 %v549
        %918 = vmatprep.subr.mxu0 %v548
        %919 = vmatpush1.msra.mxu0 %v547
        %920 = vmatprep.subr.mxu0 %v546
        %921 = vmatpush1.msra.mxu0 %v545
        %922 = vmatprep.subr.mxu0 %v544
        %923 = vmatpush1.msra.mxu0 %v543
        %924 = vmatprep.subr.mxu0 %v542
        %925 = vmatpush1.msra.mxu0 %v541
        %926 = vmatprep.subr.mxu0 %v604
        %927 = vmatpush2.msra.mxu0 %v603
        %928 = vmatprep.subr.mxu0 %v602
        %929 = vmatpush2.msra.mxu0 %v601
        %930 = vmatprep.subr.mxu0 %v600
        %931 = vmatpush2.msra.mxu0 %v599
        %932 = vmatprep.subr.mxu0 %v598
        %933 = vmatpush2.msra.mxu0 %v597
        %934 = vmatprep.subr.mxu0 %v596
        %935 = vmatpush2.msra.mxu0 %v595
        %936 = vmatprep.subr.mxu0 %v594
        %937 = vmatpush2.msra.mxu0 %v593
        %938 = vmatprep.subr.mxu0 %v592
        %939 = vmatpush2.msra.mxu0 %v591
        %940 = vmatprep.subr.mxu0 %v590
        %941 = vmatpush2.msra.mxu0 %v589
        %942 = vmatprep.subr.mxu0 %v588
        %943 = vmatpush2.msra.mxu0 %v587
        %944 = vmatprep.subr.mxu0 %v586
        %945 = vmatpush2.msra.mxu0 %v585
        %946 = vmatprep.subr.mxu0 %v584
        %947 = vmatpush2.msra.mxu0 %v583
        %948 = vmatprep.subr.mxu0 %v582
        %949 = vmatpush2.msra.mxu0 %v581
        %950 = vmatprep.subr.mxu0 %v580
        %951 = vmatpush2.msra.mxu0 %v579
        %952 = vmatprep.subr.mxu0 %v578
        %953 = vmatpush2.msra.mxu0 %v577
        %954 = vmatprep.subr.mxu0 %v576
        %955 = vmatpush2.msra.mxu0 %v575
        %956 = vmatprep.subr.mxu0 %v574
        %957 = vmatpush2.msra.mxu0 %v573
        %958 = vmatprep.mubr.f32.mxu0 %v352
        %959 = vmatmul.mubr.f32.gmra.mxu0 %v351
        %v960 = vpop.f32.mrf.mxu0
        %v961 = vadd.f32 %v800, %v960
        %v962 = vpop.f32.mrf.mxu0
        %v963 = vadd.f32 %v802, %v962
        %964 = vmatprep.mubr.f32.mxu0 %v360
        %965 = vmatmul.mubr.f32.gmra.mxu0 %v359
        %v966 = vpop.f32.mrf.mxu0
        %v967 = vadd.f32 %v806, %v966
        %v968 = vpop.f32.mrf.mxu0
        %v969 = vadd.f32 %v808, %v968
        %970 = vmatprep.mubr.f32.mxu0 %v368
        %971 = vmatmul.mubr.f32.gmra.mxu0 %v367
        %v972 = vpop.f32.mrf.mxu0
        %v973 = vadd.f32 %v812, %v972
        %v974 = vpop.f32.mrf.mxu0
        %v975 = vadd.f32 %v814, %v974
        %976 = vmatprep.mubr.f32.mxu0 %v376
        %977 = vmatmul.mubr.f32.gmra.mxu0 %v375
        %v978 = vpop.f32.mrf.mxu0
        %v979 = vadd.f32 %v818, %v978
        %v980 = vpop.f32.mrf.mxu0
        %v981 = vadd.f32 %v820, %v980
        %982 = vmatprep.mubr.f32.mxu0 %v384
        %983 = vmatmul.mubr.f32.gmra.mxu0 %v383
        %v984 = vpop.f32.mrf.mxu0
        %v985 = vadd.f32 %v824, %v984
        %v986 = vpop.f32.mrf.mxu0
        %v987 = vadd.f32 %v826, %v986
        %988 = vmatprep.mubr.f32.mxu0 %v392
        %989 = vmatmul.mubr.f32.gmra.mxu0 %v391
        %v990 = vpop.f32.mrf.mxu0
        %v991 = vadd.f32 %v830, %v990
        %v992 = vpop.f32.mrf.mxu0
        %v993 = vadd.f32 %v832, %v992
        %994 = vmatprep.mubr.f32.mxu0 %v400
        %995 = vmatmul.mubr.f32.gmra.mxu0 %v399
        %v996 = vpop.f32.mrf.mxu0
        %v997 = vadd.f32 %v836, %v996
        %v998 = vpop.f32.mrf.mxu0
        %v999 = vadd.f32 %v838, %v998
        %1000 = vmatprep.mubr.f32.mxu0 %v408
        %1001 = vmatmul.mubr.f32.gmra.mxu0 %v407
        %v1002 = vpop.f32.mrf.mxu0
        %v1003 = vadd.f32 %v842, %v1002
        %v1004 = vpop.f32.mrf.mxu0
        %v1005 = vadd.f32 %v844, %v1004
        %1006 = vmatprep.mubr.f32.mxu0 %v416
        %1007 = vmatmul.mubr.f32.gmra.mxu0 %v415
        %v1008 = vpop.f32.mrf.mxu0
        %v1009 = vadd.f32 %v848, %v1008
        %v1010 = vpop.f32.mrf.mxu0
        %v1011 = vadd.f32 %v850, %v1010
        %1012 = vmatprep.mubr.f32.mxu0 %v424
        %1013 = vmatmul.mubr.f32.gmra.mxu0 %v423
        %v1014 = vpop.f32.mrf.mxu0
        %v1015 = vadd.f32 %v854, %v1014
        %v1016 = vpop.f32.mrf.mxu0
        %v1017 = vadd.f32 %v856, %v1016
        %1018 = vmatprep.mubr.f32.mxu0 %v432
        %1019 = vmatmul.mubr.f32.gmra.mxu0 %v431
        %v1020 = vpop.f32.mrf.mxu0
        %v1021 = vadd.f32 %v860, %v1020
        %v1022 = vpop.f32.mrf.mxu0
        %v1023 = vadd.f32 %v862, %v1022
        %1024 = vmatprep.mubr.f32.mxu0 %v440
        %1025 = vmatmul.mubr.f32.gmra.mxu0 %v439
        %v1026 = vpop.f32.mrf.mxu0
        %v1027 = vadd.f32 %v866, %v1026
        %v1028 = vpop.f32.mrf.mxu0
        %v1029 = vadd.f32 %v868, %v1028
        %1030 = vmatprep.mubr.f32.mxu0 %v448
        %1031 = vmatmul.mubr.f32.gmra.mxu0 %v447
        %v1032 = vpop.f32.mrf.mxu0
        %v1033 = vadd.f32 %v872, %v1032
        %v1034 = vpop.f32.mrf.mxu0
        %v1035 = vadd.f32 %v874, %v1034
        %1036 = vmatprep.mubr.f32.mxu0 %v456
        %1037 = vmatmul.mubr.f32.gmra.mxu0 %v455
        %v1038 = vpop.f32.mrf.mxu0
        %v1039 = vadd.f32 %v878, %v1038
        %v1040 = vpop.f32.mrf.mxu0
        %v1041 = vadd.f32 %v880, %v1040
        %1042 = vmatprep.mubr.f32.mxu0 %v464
        %1043 = vmatmul.mubr.f32.gmra.mxu0 %v463
        %v1044 = vpop.f32.mrf.mxu0
        %v1045 = vadd.f32 %v884, %v1044
        %v1046 = vpop.f32.mrf.mxu0
        %v1047 = vadd.f32 %v886, %v1046
        %1048 = vmatprep.mubr.f32.mxu0 %v472
        %1049 = vmatmul.mubr.f32.gmra.mxu0 %v471
        %v1050 = vpop.f32.mrf.mxu0
        %v1051 = vadd.f32 %v890, %v1050
        %v1052 = vpop.f32.mrf.mxu0
        %v1053 = vadd.f32 %v892, %v1052
        %1054 = vdwg.mxu0
        %1055 = vmatprep.subr.mxu0 %v636
        %1056 = vmatpush1.msra.mxu0 %v635
        %1057 = vmatprep.subr.mxu0 %v634
        %1058 = vmatpush1.msra.mxu0 %v633
        %1059 = vmatprep.subr.mxu0 %v632
        %1060 = vmatpush1.msra.mxu0 %v631
        %1061 = vmatprep.subr.mxu0 %v630
        %1062 = vmatpush1.msra.mxu0 %v629
        %1063 = vmatprep.subr.mxu0 %v628
        %1064 = vmatpush1.msra.mxu0 %v627
        %1065 = vmatprep.subr.mxu0 %v626
        %1066 = vmatpush1.msra.mxu0 %v625
        %1067 = vmatprep.subr.mxu0 %v624
        %1068 = vmatpush1.msra.mxu0 %v623
        %1069 = vmatprep.subr.mxu0 %v622
        %1070 = vmatpush1.msra.mxu0 %v621
        %1071 = vmatprep.subr.mxu0 %v620
        %1072 = vmatpush1.msra.mxu0 %v619
        %1073 = vmatprep.subr.mxu0 %v618
        %1074 = vmatpush1.msra.mxu0 %v617
        %1075 = vmatprep.subr.mxu0 %v616
        %1076 = vmatpush1.msra.mxu0 %v615
        %1077 = vmatprep.subr.mxu0 %v614
        %1078 = vmatpush1.msra.mxu0 %v613
        %1079 = vmatprep.subr.mxu0 %v612
        %1080 = vmatpush1.msra.mxu0 %v611
        %1081 = vmatprep.subr.mxu0 %v610
        %1082 = vmatpush1.msra.mxu0 %v609
        %1083 = vmatprep.subr.mxu0 %v608
        %1084 = vmatpush1.msra.mxu0 %v607
        %1085 = vmatprep.subr.mxu0 %v606
        %1086 = vmatpush1.msra.mxu0 %v605
        %1087 = vmatprep.subr.mxu0 %v668
        %1088 = vmatpush2.msra.mxu0 %v667
        %1089 = vmatprep.subr.mxu0 %v666
        %1090 = vmatpush2.msra.mxu0 %v665
        %1091 = vmatprep.subr.mxu0 %v664
        %1092 = vmatpush2.msra.mxu0 %v663
        %1093 = vmatprep.subr.mxu0 %v662
        %1094 = vmatpush2.msra.mxu0 %v661
        %1095 = vmatprep.subr.mxu0 %v660
        %1096 = vmatpush2.msra.mxu0 %v659
        %1097 = vmatprep.subr.mxu0 %v658
        %1098 = vmatpush2.msra.mxu0 %v657
        %1099 = vmatprep.subr.mxu0 %v656
        %1100 = vmatpush2.msra.mxu0 %v655
        %1101 = vmatprep.subr.mxu0 %v654
        %1102 = vmatpush2.msra.mxu0 %v653
        %1103 = vmatprep.subr.mxu0 %v652
        %1104 = vmatpush2.msra.mxu0 %v651
        %1105 = vmatprep.subr.mxu0 %v650
        %1106 = vmatpush2.msra.mxu0 %v649
        %1107 = vmatprep.subr.mxu0 %v648
        %1108 = vmatpush2.msra.mxu0 %v647
        %1109 = vmatprep.subr.mxu0 %v646
        %1110 = vmatpush2.msra.mxu0 %v645
        %1111 = vmatprep.subr.mxu0 %v644
        %1112 = vmatpush2.msra.mxu0 %v643
        %1113 = vmatprep.subr.mxu0 %v642
        %1114 = vmatpush2.msra.mxu0 %v641
        %1115 = vmatprep.subr.mxu0 %v640
        %1116 = vmatpush2.msra.mxu0 %v639
        %1117 = vmatprep.subr.mxu0 %v638
        %1118 = vmatpush2.msra.mxu0 %v637
        %1119 = vmatprep.mubr.f32.mxu0 %v354
        %1120 = vmatmul.mubr.f32.gmra.mxu0 %v353
        %v1121 = vpop.f32.mrf.mxu0
        %v1122 = vadd.f32 %v961, %v1121
        %v1123 = vpop.f32.mrf.mxu0
        %v1124 = vadd.f32 %v963, %v1123
        %1125 = vmatprep.mubr.f32.mxu0 %v362
        %1126 = vmatmul.mubr.f32.gmra.mxu0 %v361
        %v1127 = vpop.f32.mrf.mxu0
        %v1128 = vadd.f32 %v967, %v1127
        %v1129 = vpop.f32.mrf.mxu0
        %v1130 = vadd.f32 %v969, %v1129
        %1131 = vmatprep.mubr.f32.mxu0 %v370
        %1132 = vmatmul.mubr.f32.gmra.mxu0 %v369
        %v1133 = vpop.f32.mrf.mxu0
        %v1134 = vadd.f32 %v973, %v1133
        %v1135 = vpop.f32.mrf.mxu0
        %v1136 = vadd.f32 %v975, %v1135
        %1137 = vmatprep.mubr.f32.mxu0 %v378
        %1138 = vmatmul.mubr.f32.gmra.mxu0 %v377
        %v1139 = vpop.f32.mrf.mxu0
        %v1140 = vadd.f32 %v979, %v1139
        %v1141 = vpop.f32.mrf.mxu0
        %v1142 = vadd.f32 %v981, %v1141
        %1143 = vmatprep.mubr.f32.mxu0 %v386
        %1144 = vmatmul.mubr.f32.gmra.mxu0 %v385
        %v1145 = vpop.f32.mrf.mxu0
        %v1146 = vadd.f32 %v985, %v1145
        %v1147 = vpop.f32.mrf.mxu0
        %v1148 = vadd.f32 %v987, %v1147
        %1149 = vmatprep.mubr.f32.mxu0 %v394
        %1150 = vmatmul.mubr.f32.gmra.mxu0 %v393
        %v1151 = vpop.f32.mrf.mxu0
        %v1152 = vadd.f32 %v991, %v1151
        %v1153 = vpop.f32.mrf.mxu0
        %v1154 = vadd.f32 %v993, %v1153
        %1155 = vmatprep.mubr.f32.mxu0 %v402
        %1156 = vmatmul.mubr.f32.gmra.mxu0 %v401
        %v1157 = vpop.f32.mrf.mxu0
        %v1158 = vadd.f32 %v997, %v1157
        %v1159 = vpop.f32.mrf.mxu0
        %v1160 = vadd.f32 %v999, %v1159
        %1161 = vmatprep.mubr.f32.mxu0 %v410
        %1162 = vmatmul.mubr.f32.gmra.mxu0 %v409
        %v1163 = vpop.f32.mrf.mxu0
        %v1164 = vadd.f32 %v1003, %v1163
        %v1165 = vpop.f32.mrf.mxu0
        %v1166 = vadd.f32 %v1005, %v1165
        %1167 = vmatprep.mubr.f32.mxu0 %v418
        %1168 = vmatmul.mubr.f32.gmra.mxu0 %v417
        %v1169 = vpop.f32.mrf.mxu0
        %v1170 = vadd.f32 %v1009, %v1169
        %v1171 = vpop.f32.mrf.mxu0
        %v1172 = vadd.f32 %v1011, %v1171
        %1173 = vmatprep.mubr.f32.mxu0 %v426
        %1174 = vmatmul.mubr.f32.gmra.mxu0 %v425
        %v1175 = vpop.f32.mrf.mxu0
        %v1176 = vadd.f32 %v1015, %v1175
        %v1177 = vpop.f32.mrf.mxu0
        %v1178 = vadd.f32 %v1017, %v1177
        %1179 = vmatprep.mubr.f32.mxu0 %v434
        %1180 = vmatmul.mubr.f32.gmra.mxu0 %v433
        %v1181 = vpop.f32.mrf.mxu0
        %v1182 = vadd.f32 %v1021, %v1181
        %v1183 = vpop.f32.mrf.mxu0
        %v1184 = vadd.f32 %v1023, %v1183
        %1185 = vmatprep.mubr.f32.mxu0 %v442
        %1186 = vmatmul.mubr.f32.gmra.mxu0 %v441
        %v1187 = vpop.f32.mrf.mxu0
        %v1188 = vadd.f32 %v1027, %v1187
        %v1189 = vpop.f32.mrf.mxu0
        %v1190 = vadd.f32 %v1029, %v1189
        %1191 = vmatprep.mubr.f32.mxu0 %v450
        %1192 = vmatmul.mubr.f32.gmra.mxu0 %v449
        %v1193 = vpop.f32.mrf.mxu0
        %v1194 = vadd.f32 %v1033, %v1193
        %v1195 = vpop.f32.mrf.mxu0
        %v1196 = vadd.f32 %v1035, %v1195
        %1197 = vmatprep.mubr.f32.mxu0 %v458
        %1198 = vmatmul.mubr.f32.gmra.mxu0 %v457
        %v1199 = vpop.f32.mrf.mxu0
        %v1200 = vadd.f32 %v1039, %v1199
        %v1201 = vpop.f32.mrf.mxu0
        %v1202 = vadd.f32 %v1041, %v1201
        %1203 = vmatprep.mubr.f32.mxu0 %v466
        %1204 = vmatmul.mubr.f32.gmra.mxu0 %v465
        %v1205 = vpop.f32.mrf.mxu0
        %v1206 = vadd.f32 %v1045, %v1205
        %v1207 = vpop.f32.mrf.mxu0
        %v1208 = vadd.f32 %v1047, %v1207
        %1209 = vmatprep.mubr.f32.mxu0 %v474
        %1210 = vmatmul.mubr.f32.gmra.mxu0 %v473
        %v1211 = vpop.f32.mrf.mxu0
        %v1212 = vadd.f32 %v1051, %v1211
        %v1213 = vpop.f32.mrf.mxu0
        %v1214 = vadd.f32 %v1053, %v1213
        %1215 = vdwg.mxu0
        %1216 = vmatprep.subr.mxu0 %v700
        %1217 = vmatpush1.msra.mxu0 %v699
        %1218 = vmatprep.subr.mxu0 %v698
        %1219 = vmatpush1.msra.mxu0 %v697
        %1220 = vmatprep.subr.mxu0 %v696
        %1221 = vmatpush1.msra.mxu0 %v695
        %1222 = vmatprep.subr.mxu0 %v694
        %1223 = vmatpush1.msra.mxu0 %v693
        %1224 = vmatprep.subr.mxu0 %v692
        %1225 = vmatpush1.msra.mxu0 %v691
        %1226 = vmatprep.subr.mxu0 %v690
        %1227 = vmatpush1.msra.mxu0 %v689
        %1228 = vmatprep.subr.mxu0 %v688
        %1229 = vmatpush1.msra.mxu0 %v687
        %1230 = vmatprep.subr.mxu0 %v686
        %1231 = vmatpush1.msra.mxu0 %v685
        %1232 = vmatprep.subr.mxu0 %v684
        %1233 = vmatpush1.msra.mxu0 %v683
        %1234 = vmatprep.subr.mxu0 %v682
        %1235 = vmatpush1.msra.mxu0 %v681
        %1236 = vmatprep.subr.mxu0 %v680
        %1237 = vmatpush1.msra.mxu0 %v679
        %1238 = vmatprep.subr.mxu0 %v678
        %1239 = vmatpush1.msra.mxu0 %v677
        %1240 = vmatprep.subr.mxu0 %v676
        %1241 = vmatpush1.msra.mxu0 %v675
        %1242 = vmatprep.subr.mxu0 %v674
        %1243 = vmatpush1.msra.mxu0 %v673
        %1244 = vmatprep.subr.mxu0 %v672
        %1245 = vmatpush1.msra.mxu0 %v671
        %1246 = vmatprep.subr.mxu0 %v670
        %1247 = vmatpush1.msra.mxu0 %v669
        %1248 = vmatprep.subr.mxu0 %v732
        %1249 = vmatpush2.msra.mxu0 %v731
        %1250 = vmatprep.subr.mxu0 %v730
        %1251 = vmatpush2.msra.mxu0 %v729
        %1252 = vmatprep.subr.mxu0 %v728
        %1253 = vmatpush2.msra.mxu0 %v727
        %1254 = vmatprep.subr.mxu0 %v726
        %1255 = vmatpush2.msra.mxu0 %v725
        %1256 = vmatprep.subr.mxu0 %v724
        %1257 = vmatpush2.msra.mxu0 %v723
        %1258 = vmatprep.subr.mxu0 %v722
        %1259 = vmatpush2.msra.mxu0 %v721
        %1260 = vmatprep.subr.mxu0 %v720
        %1261 = vmatpush2.msra.mxu0 %v719
        %1262 = vmatprep.subr.mxu0 %v718
        %1263 = vmatpush2.msra.mxu0 %v717
        %1264 = vmatprep.subr.mxu0 %v716
        %1265 = vmatpush2.msra.mxu0 %v715
        %1266 = vmatprep.subr.mxu0 %v714
        %1267 = vmatpush2.msra.mxu0 %v713
        %1268 = vmatprep.subr.mxu0 %v712
        %1269 = vmatpush2.msra.mxu0 %v711
        %1270 = vmatprep.subr.mxu0 %v710
        %1271 = vmatpush2.msra.mxu0 %v709
        %1272 = vmatprep.subr.mxu0 %v708
        %1273 = vmatpush2.msra.mxu0 %v707
        %1274 = vmatprep.subr.mxu0 %v706
        %1275 = vmatpush2.msra.mxu0 %v705
        %1276 = vmatprep.subr.mxu0 %v704
        %1277 = vmatpush2.msra.mxu0 %v703
        %1278 = vmatprep.subr.mxu0 %v702
        %1279 = vmatpush2.msra.mxu0 %v701
        %1280 = vmatprep.mubr.f32.mxu0 %v356
        %1281 = vmatmul.mubr.f32.gmra.mxu0 %v355
        %v1282 = vpop.f32.mrf.mxu0
        %v1283 = vadd.f32 %v1122, %v1282
        %v1284 = vpop.f32.mrf.mxu0
        %v1285 = vadd.f32 %v1124, %v1284
        %1286 = vmatprep.mubr.f32.mxu0 %v364
        %1287 = vmatmul.mubr.f32.gmra.mxu0 %v363
        %v1288 = vpop.f32.mrf.mxu0
        %v1289 = vadd.f32 %v1128, %v1288
        %v1290 = vpop.f32.mrf.mxu0
        %v1291 = vadd.f32 %v1130, %v1290
        %1292 = vmatprep.mubr.f32.mxu0 %v372
        %1293 = vmatmul.mubr.f32.gmra.mxu0 %v371
        %v1294 = vpop.f32.mrf.mxu0
        %v1295 = vadd.f32 %v1134, %v1294
        %v1296 = vpop.f32.mrf.mxu0
        %v1297 = vadd.f32 %v1136, %v1296
        %1298 = vmatprep.mubr.f32.mxu0 %v380
        %1299 = vmatmul.mubr.f32.gmra.mxu0 %v379
        %v1300 = vpop.f32.mrf.mxu0
        %v1301 = vadd.f32 %v1140, %v1300
        %v1302 = vpop.f32.mrf.mxu0
        %v1303 = vadd.f32 %v1142, %v1302
        %1304 = vmatprep.mubr.f32.mxu0 %v388
        %1305 = vmatmul.mubr.f32.gmra.mxu0 %v387
        %v1306 = vpop.f32.mrf.mxu0
        %v1307 = vadd.f32 %v1146, %v1306
        %v1308 = vpop.f32.mrf.mxu0
        %v1309 = vadd.f32 %v1148, %v1308
        %1310 = vmatprep.mubr.f32.mxu0 %v396
        %1311 = vmatmul.mubr.f32.gmra.mxu0 %v395
        %v1312 = vpop.f32.mrf.mxu0
        %v1313 = vadd.f32 %v1152, %v1312
        %v1314 = vpop.f32.mrf.mxu0
        %v1315 = vadd.f32 %v1154, %v1314
        %1316 = vmatprep.mubr.f32.mxu0 %v404
        %1317 = vmatmul.mubr.f32.gmra.mxu0 %v403
        %v1318 = vpop.f32.mrf.mxu0
        %v1319 = vadd.f32 %v1158, %v1318
        %v1320 = vpop.f32.mrf.mxu0
        %v1321 = vadd.f32 %v1160, %v1320
        %1322 = vmatprep.mubr.f32.mxu0 %v412
        %1323 = vmatmul.mubr.f32.gmra.mxu0 %v411
        %v1324 = vpop.f32.mrf.mxu0
        %v1325 = vadd.f32 %v1164, %v1324
        %v1326 = vpop.f32.mrf.mxu0
        %v1327 = vadd.f32 %v1166, %v1326
        %1328 = vmatprep.mubr.f32.mxu0 %v420
        %1329 = vmatmul.mubr.f32.gmra.mxu0 %v419
        %v1330 = vpop.f32.mrf.mxu0
        %v1331 = vadd.f32 %v1170, %v1330
        %v1332 = vpop.f32.mrf.mxu0
        %v1333 = vadd.f32 %v1172, %v1332
        %1334 = vmatprep.mubr.f32.mxu0 %v428
        %1335 = vmatmul.mubr.f32.gmra.mxu0 %v427
        %v1336 = vpop.f32.mrf.mxu0
        %v1337 = vadd.f32 %v1176, %v1336
        %v1338 = vpop.f32.mrf.mxu0
        %v1339 = vadd.f32 %v1178, %v1338
        %1340 = vmatprep.mubr.f32.mxu0 %v436
        %1341 = vmatmul.mubr.f32.gmra.mxu0 %v435
        %v1342 = vpop.f32.mrf.mxu0
        %v1343 = vadd.f32 %v1182, %v1342
        %v1344 = vpop.f32.mrf.mxu0
        %v1345 = vadd.f32 %v1184, %v1344
        %1346 = vmatprep.mubr.f32.mxu0 %v444
        %1347 = vmatmul.mubr.f32.gmra.mxu0 %v443
        %v1348 = vpop.f32.mrf.mxu0
        %v1349 = vadd.f32 %v1188, %v1348
        %v1350 = vpop.f32.mrf.mxu0
        %v1351 = vadd.f32 %v1190, %v1350
        %1352 = vmatprep.mubr.f32.mxu0 %v452
        %1353 = vmatmul.mubr.f32.gmra.mxu0 %v451
        %v1354 = vpop.f32.mrf.mxu0
        %v1355 = vadd.f32 %v1194, %v1354
        %v1356 = vpop.f32.mrf.mxu0
        %v1357 = vadd.f32 %v1196, %v1356
        %1358 = vmatprep.mubr.f32.mxu0 %v460
        %1359 = vmatmul.mubr.f32.gmra.mxu0 %v459
        %v1360 = vpop.f32.mrf.mxu0
        %v1361 = vadd.f32 %v1200, %v1360
        %v1362 = vpop.f32.mrf.mxu0
        %v1363 = vadd.f32 %v1202, %v1362
        %1364 = vmatprep.mubr.f32.mxu0 %v468
        %1365 = vmatmul.mubr.f32.gmra.mxu0 %v467
        %v1366 = vpop.f32.mrf.mxu0
        %v1367 = vadd.f32 %v1206, %v1366
        %v1368 = vpop.f32.mrf.mxu0
        %v1369 = vadd.f32 %v1208, %v1368
        %1370 = vmatprep.mubr.f32.mxu0 %v476
        %1371 = vmatmul.mubr.f32.gmra.mxu0 %v475
        %v1372 = vpop.f32.mrf.mxu0
        %v1373 = vadd.f32 %v1212, %v1372
        %v1374 = vpop.f32.mrf.mxu0
        %v1375 = vadd.f32 %v1214, %v1374
        %1376 = vdwg.mxu0
        %v1377 = vadd.f32 %v317, %v1283
        %v1378 = vadd.f32 %v318, %v1285
        %v1379 = vadd.f32 %v319, %v1289
        %v1380 = vadd.f32 %v320, %v1291
        %v1381 = vadd.f32 %v321, %v1295
        %v1382 = vadd.f32 %v322, %v1297
        %v1383 = vadd.f32 %v323, %v1301
        %v1384 = vadd.f32 %v324, %v1303
        %v1385 = vadd.f32 %v325, %v1307
        %v1386 = vadd.f32 %v326, %v1309
        %v1387 = vadd.f32 %v327, %v1313
        %v1388 = vadd.f32 %v328, %v1315
        %v1389 = vadd.f32 %v329, %v1319
        %v1390 = vadd.f32 %v330, %v1321
        %v1391 = vadd.f32 %v331, %v1325
        %v1392 = vadd.f32 %v332, %v1327
        %v1393 = vadd.f32 %v333, %v1331
        %v1394 = vadd.f32 %v334, %v1333
        %v1395 = vadd.f32 %v335, %v1337
        %v1396 = vadd.f32 %v336, %v1339
        %v1397 = vadd.f32 %v337, %v1343
        %v1398 = vadd.f32 %v338, %v1345
        %v1399 = vadd.f32 %v339, %v1349
        %v1400 = vadd.f32 %v340, %v1351
        %v1401 = vadd.f32 %v341, %v1355
        %v1402 = vadd.f32 %v342, %v1357
        %v1403 = vadd.f32 %v343, %v1361
        %v1404 = vadd.f32 %v344, %v1363
        %v1405 = vadd.f32 %v345, %v1367
        %v1406 = vadd.f32 %v346, %v1369
        %v1407 = vadd.f32 %v347, %v1373
        %v1408 = vadd.f32 %v348, %v1375
        %1409 = vst [vmem:[%s263] sm:$0xff] %v1377
        %1410 = vst [vmem:[%s263 + $0x8] sm:$0xff] %v1378
        %1411 = vst [vmem:[%s263 + $0x10] sm:$0xff] %v1379
        %1412 = vst [vmem:[%s263 + $0x18] sm:$0xff] %v1380
        %1413 = vst [vmem:[%s263 + $0x20] sm:$0xff] %v1381
        %1414 = vst [vmem:[%s263 + $0x28] sm:$0xff] %v1382
        %1415 = vst [vmem:[%s263 + $0x30] sm:$0xff] %v1383
        %1416 = vst [vmem:[%s263 + $0x38] sm:$0xff] %v1384
        %1417 = vst [vmem:[%s263 + $0x40] sm:$0xff] %v1385
        %1418 = vst [vmem:[%s263 + $0x48] sm:$0xff] %v1386
        %1419 = vst [vmem:[%s263 + $0x50] sm:$0xff] %v1387
        %1420 = vst [vmem:[%s263 + $0x58] sm:$0xff] %v1388
        %1421 = vst [vmem:[%s263 + $0x60] sm:$0xff] %v1389
        %1422 = vst [vmem:[%s263 + $0x68] sm:$0xff] %v1390
        %1423 = vst [vmem:[%s263 + $0x70] sm:$0xff] %v1391
        %1424 = vst [vmem:[%s263 + $0x78] sm:$0xff] %v1392
        %1425 = vst [vmem:[%s263 + $0x80] sm:$0xff] %v1393
        %1426 = vst [vmem:[%s263 + $0x88] sm:$0xff] %v1394
        %1427 = vst [vmem:[%s263 + $0x90] sm:$0xff] %v1395
        %1428 = vst [vmem:[%s263 + $0x98] sm:$0xff] %v1396
        %1429 = vst [vmem:[%s263 + $0xa0] sm:$0xff] %v1397
        %1430 = vst [vmem:[%s263 + $0xa8] sm:$0xff] %v1398
        %1431 = vst [vmem:[%s263 + $0xb0] sm:$0xff] %v1399
        %1432 = vst [vmem:[%s263 + $0xb8] sm:$0xff] %v1400
        %1433 = vst [vmem:[%s263 + $0xc0] sm:$0xff] %v1401
        %1434 = vst [vmem:[%s263 + $0xc8] sm:$0xff] %v1402
        %1435 = vst [vmem:[%s263 + $0xd0] sm:$0xff] %v1403
        %1436 = vst [vmem:[%s263 + $0xd8] sm:$0xff] %v1404
        %1437 = vst [vmem:[%s263 + $0xe0] sm:$0xff] %v1405
        %1438 = vst [vmem:[%s263 + $0xe8] sm:$0xff] %v1406
        %1439 = vst [vmem:[%s263 + $0xf0] sm:$0xff] %v1407
        %1440 = vst [vmem:[%s263 + $0xf8] sm:$0xff] %v1408
        // Predicated region
        $region49: #{tpu_custom_call.1} parent=31 // pred_check
          %p1441 = pneg %p269
        $region50: #{tpu_custom_call.1} parent=31 // pred_check_branch
          %1443 = sbr.rel (%p1441) target = $region52
        $region51: #{tpu_custom_call.1} parent=31 // pred_region
          %v1444 = vld [vmem:[%s263] sm:$0xff]
          %v1445 = vld [vmem:[%s263 + $0x8] sm:$0xff]
          %v1446 = vld [vmem:[%s263 + $0x10] sm:$0xff]
          %v1447 = vld [vmem:[%s263 + $0x18] sm:$0xff]
          %v1448 = vld [vmem:[%s263 + $0x20] sm:$0xff]
          %v1449 = vld [vmem:[%s263 + $0x28] sm:$0xff]
          %v1450 = vld [vmem:[%s263 + $0x30] sm:$0xff]
          %v1451 = vld [vmem:[%s263 + $0x38] sm:$0xff]
          %v1452 = vld [vmem:[%s263 + $0x40] sm:$0xff]
          %v1453 = vld [vmem:[%s263 + $0x48] sm:$0xff]
          %v1454 = vld [vmem:[%s263 + $0x50] sm:$0xff]
          %v1455 = vld [vmem:[%s263 + $0x58] sm:$0xff]
          %v1456 = vld [vmem:[%s263 + $0x60] sm:$0xff]
          %v1457 = vld [vmem:[%s263 + $0x68] sm:$0xff]
          %v1458 = vld [vmem:[%s263 + $0x70] sm:$0xff]
          %v1459 = vld [vmem:[%s263 + $0x78] sm:$0xff]
          %v1460 = vld [vmem:[%s263 + $0x80] sm:$0xff]
          %v1461 = vld [vmem:[%s263 + $0x88] sm:$0xff]
          %v1462 = vld [vmem:[%s263 + $0x90] sm:$0xff]
          %v1463 = vld [vmem:[%s263 + $0x98] sm:$0xff]
          %v1464 = vld [vmem:[%s263 + $0xa0] sm:$0xff]
          %v1465 = vld [vmem:[%s263 + $0xa8] sm:$0xff]
          %v1466 = vld [vmem:[%s263 + $0xb0] sm:$0xff]
          %v1467 = vld [vmem:[%s263 + $0xb8] sm:$0xff]
          %v1468 = vld [vmem:[%s263 + $0xc0] sm:$0xff]
          %v1469 = vld [vmem:[%s263 + $0xc8] sm:$0xff]
          %v1470 = vld [vmem:[%s263 + $0xd0] sm:$0xff]
          %v1471 = vld [vmem:[%s263 + $0xd8] sm:$0xff]
          %v1472 = vld [vmem:[%s263 + $0xe0] sm:$0xff]
          %v1473 = vld [vmem:[%s263 + $0xe8] sm:$0xff]
          %v1474 = vld [vmem:[%s263 + $0xf0] sm:$0xff]
          %v1475 = vld [vmem:[%s263 + $0xf8] sm:$0xff]
          %v1476 = vadd.f32 %v1444, %v1446
          %v1477 = vadd.f32 %v1476, %v1448
          %v1478 = vadd.f32 %v1477, %v1450
          %v1479 = vadd.f32 %v1478, %v1452
          %v1480 = vadd.f32 %v1479, %v1454
          %v1481 = vadd.f32 %v1480, %v1456
          %v1482 = vadd.f32 %v1481, %v1458
          %v1483 = vadd.f32 %v1482, %v1460
          %v1484 = vadd.f32 %v1483, %v1462
          %v1485 = vadd.f32 %v1484, %v1464
          %v1486 = vadd.f32 %v1485, %v1466
          %v1487 = vadd.f32 %v1486, %v1468
          %v1488 = vadd.f32 %v1487, %v1470
          %v1489 = vadd.f32 %v1488, %v1472
          %v1490 = vadd.f32 %v1489, %v1474
          %v1491 = vrot.slane %v1490, 4
          %v1492 = vadd.f32 %v1490, %v1491
          %v1493 = vrot.slane %v1492, 2
          %v1494 = vadd.f32 %v1492, %v1493
          %v1495 = vrot.slane %v1494, 1
          %v1496 = vadd.f32 %v1494, %v1495
          %v1497 = vadd.f32 %v1445, %v1447
          %v1498 = vadd.f32 %v1497, %v1449
          %v1499 = vadd.f32 %v1498, %v1451
          %v1500 = vadd.f32 %v1499, %v1453
          %v1501 = vadd.f32 %v1500, %v1455
          %v1502 = vadd.f32 %v1501, %v1457
          %v1503 = vadd.f32 %v1502, %v1459
          %v1504 = vadd.f32 %v1503, %v1461
          %v1505 = vadd.f32 %v1504, %v1463
          %v1506 = vadd.f32 %v1505, %v1465
          %v1507 = vadd.f32 %v1506, %v1467
          %v1508 = vadd.f32 %v1507, %v1469
          %v1509 = vadd.f32 %v1508, %v1471
          %v1510 = vadd.f32 %v1509, %v1473
          %v1511 = vadd.f32 %v1510, %v1475
          %v1512 = vrot.slane %v1511, 4
          %v1513 = vadd.f32 %v1511, %v1512
          %v1514 = vrot.slane %v1513, 2
          %v1515 = vadd.f32 %v1513, %v1514
          %v1516 = vrot.slane %v1515, 1
          %v1517 = vadd.f32 %v1515, %v1516
          %v1518 = vmul.f32 %v1496, 0.0078125
          %v1519 = vmul.f32 %v1517, 0.0078125
          %v1520 = vmul.f32 %v1444, %v1444
          %v1521 = vmul.f32 %v1445, %v1445
          %v1522 = vmul.f32 %v1446, %v1446
          %v1523 = vmul.f32 %v1447, %v1447
          %v1524 = vmul.f32 %v1448, %v1448
          %v1525 = vmul.f32 %v1449, %v1449
          %v1526 = vmul.f32 %v1450, %v1450
          %v1527 = vmul.f32 %v1451, %v1451
          %v1528 = vmul.f32 %v1452, %v1452
          %v1529 = vmul.f32 %v1453, %v1453
          %v1530 = vmul.f32 %v1454, %v1454
          %v1531 = vmul.f32 %v1455, %v1455
          %v1532 = vmul.f32 %v1456, %v1456
          %v1533 = vmul.f32 %v1457, %v1457
          %v1534 = vmul.f32 %v1458, %v1458
          %v1535 = vmul.f32 %v1459, %v1459
          %v1536 = vmul.f32 %v1460, %v1460
          %v1537 = vmul.f32 %v1461, %v1461
          %v1538 = vmul.f32 %v1462, %v1462
          %v1539 = vmul.f32 %v1463, %v1463
          %v1540 = vmul.f32 %v1464, %v1464
          %v1541 = vmul.f32 %v1465, %v1465
          %v1542 = vmul.f32 %v1466, %v1466
          %v1543 = vmul.f32 %v1467, %v1467
          %v1544 = vmul.f32 %v1468, %v1468
          %v1545 = vmul.f32 %v1469, %v1469
          %v1546 = vmul.f32 %v1470, %v1470
          %v1547 = vmul.f32 %v1471, %v1471
          %v1548 = vmul.f32 %v1472, %v1472
          %v1549 = vmul.f32 %v1473, %v1473
          %v1550 = vmul.f32 %v1474, %v1474
          %v1551 = vmul.f32 %v1475, %v1475
          %v1552 = vadd.f32 %v1520, %v1522
          %v1553 = vadd.f32 %v1552, %v1524
          %v1554 = vadd.f32 %v1553, %v1526
          %v1555 = vadd.f32 %v1554, %v1528
          %v1556 = vadd.f32 %v1555, %v1530
          %v1557 = vadd.f32 %v1556, %v1532
          %v1558 = vadd.f32 %v1557, %v1534
          %v1559 = vadd.f32 %v1558, %v1536
          %v1560 = vadd.f32 %v1559, %v1538
          %v1561 = vadd.f32 %v1560, %v1540
          %v1562 = vadd.f32 %v1561, %v1542
          %v1563 = vadd.f32 %v1562, %v1544
          %v1564 = vadd.f32 %v1563, %v1546
          %v1565 = vadd.f32 %v1564, %v1548
          %v1566 = vadd.f32 %v1565, %v1550
          %v1567 = vrot.slane %v1566, 4
          %v1568 = vadd.f32 %v1566, %v1567
          %v1569 = vrot.slane %v1568, 2
          %v1570 = vadd.f32 %v1568, %v1569
          %v1571 = vrot.slane %v1570, 1
          %v1572 = vadd.f32 %v1570, %v1571
          %v1573 = vadd.f32 %v1521, %v1523
          %v1574 = vadd.f32 %v1573, %v1525
          %v1575 = vadd.f32 %v1574, %v1527
          %v1576 = vadd.f32 %v1575, %v1529
          %v1577 = vadd.f32 %v1576, %v1531
          %v1578 = vadd.f32 %v1577, %v1533
          %v1579 = vadd.f32 %v1578, %v1535
          %v1580 = vadd.f32 %v1579, %v1537
          %v1581 = vadd.f32 %v1580, %v1539
          %v1582 = vadd.f32 %v1581, %v1541
          %v1583 = vadd.f32 %v1582, %v1543
          %v1584 = vadd.f32 %v1583, %v1545
          %v1585 = vadd.f32 %v1584, %v1547
          %v1586 = vadd.f32 %v1585, %v1549
          %v1587 = vadd.f32 %v1586, %v1551
          %v1588 = vrot.slane %v1587, 4
          %v1589 = vadd.f32 %v1587, %v1588
          %v1590 = vrot.slane %v1589, 2
          %v1591 = vadd.f32 %v1589, %v1590
          %v1592 = vrot.slane %v1591, 1
          %v1593 = vadd.f32 %v1591, %v1592
          %v1594 = vmul.f32 %v1572, 0.0078125
          %v1595 = vmul.f32 %v1593, 0.0078125
          %v1596 = vmul.f32 %v1518, %v1518
          %v1597 = vmul.f32 %v1519, %v1519
          %v1598 = vsub.f32 %v1594, %v1596
          %v1599 = vsub.f32 %v1595, %v1597
          %v1600 = vmax.f32 %v1598, 0.0
          %v1601 = vmax.f32 %v1599, 0.0
          %v1602 = vsub.f32 %v1444, %v1518
          %v1603 = vsub.f32 %v1445, %v1519
          %v1604 = vsub.f32 %v1446, %v1518
          %v1605 = vsub.f32 %v1447, %v1519
          %v1606 = vsub.f32 %v1448, %v1518
          %v1607 = vsub.f32 %v1449, %v1519
          %v1608 = vsub.f32 %v1450, %v1518
          %v1609 = vsub.f32 %v1451, %v1519
          %v1610 = vsub.f32 %v1452, %v1518
          %v1611 = vsub.f32 %v1453, %v1519
          %v1612 = vsub.f32 %v1454, %v1518
          %v1613 = vsub.f32 %v1455, %v1519
          %v1614 = vsub.f32 %v1456, %v1518
          %v1615 = vsub.f32 %v1457, %v1519
          %v1616 = vsub.f32 %v1458, %v1518
          %v1617 = vsub.f32 %v1459, %v1519
          %v1618 = vsub.f32 %v1460, %v1518
          %v1619 = vsub.f32 %v1461, %v1519
          %v1620 = vsub.f32 %v1462, %v1518
          %v1621 = vsub.f32 %v1463, %v1519
          %v1622 = vsub.f32 %v1464, %v1518
          %v1623 = vsub.f32 %v1465, %v1519
          %v1624 = vsub.f32 %v1466, %v1518
          %v1625 = vsub.f32 %v1467, %v1519
          %v1626 = vsub.f32 %v1468, %v1518
          %v1627 = vsub.f32 %v1469, %v1519
          %v1628 = vsub.f32 %v1470, %v1518
          %v1629 = vsub.f32 %v1471, %v1519
          %v1630 = vsub.f32 %v1472, %v1518
          %v1631 = vsub.f32 %v1473, %v1519
          %v1632 = vsub.f32 %v1474, %v1518
          %v1633 = vsub.f32 %v1475, %v1519
          %v1634 = vadd.f32 %v1600, 1e-05
          %v1635 = vadd.f32 %v1601, 1e-05
          %v1636 = vrsqrt.pop %v1634
          %v1637 = vrsqrt.pop %v1635
          %v1638 = vmul.f32 %v1602, %v1636
          %v1639 = vmul.f32 %v1603, %v1637
          %v1640 = vmul.f32 %v1604, %v1636
          %v1641 = vmul.f32 %v1605, %v1637
          %v1642 = vmul.f32 %v1606, %v1636
          %v1643 = vmul.f32 %v1607, %v1637
          %v1644 = vmul.f32 %v1608, %v1636
          %v1645 = vmul.f32 %v1609, %v1637
          %v1646 = vmul.f32 %v1610, %v1636
          %v1647 = vmul.f32 %v1611, %v1637
          %v1648 = vmul.f32 %v1612, %v1636
          %v1649 = vmul.f32 %v1613, %v1637
          %v1650 = vmul.f32 %v1614, %v1636
          %v1651 = vmul.f32 %v1615, %v1637
          %v1652 = vmul.f32 %v1616, %v1636
          %v1653 = vmul.f32 %v1617, %v1637
          %v1654 = vmul.f32 %v1618, %v1636
          %v1655 = vmul.f32 %v1619, %v1637
          %v1656 = vmul.f32 %v1620, %v1636
          %v1657 = vmul.f32 %v1621, %v1637
          %v1658 = vmul.f32 %v1622, %v1636
          %v1659 = vmul.f32 %v1623, %v1637
          %v1660 = vmul.f32 %v1624, %v1636
          %v1661 = vmul.f32 %v1625, %v1637
          %v1662 = vmul.f32 %v1626, %v1636
          %v1663 = vmul.f32 %v1627, %v1637
          %v1664 = vmul.f32 %v1628, %v1636
          %v1665 = vmul.f32 %v1629, %v1637
          %v1666 = vmul.f32 %v1630, %v1636
          %v1667 = vmul.f32 %v1631, %v1637
          %v1668 = vmul.f32 %v1632, %v1636
          %v1669 = vmul.f32 %v1633, %v1637
          %v1670 = vxor.u32 %v1638, 2147483648
          %v1671 = vxor.u32 %v1639, 2147483648
          %v1672 = vxor.u32 %v1640, 2147483648
          %v1673 = vxor.u32 %v1641, 2147483648
          %v1674 = vxor.u32 %v1642, 2147483648
          %v1675 = vxor.u32 %v1643, 2147483648
          %v1676 = vxor.u32 %v1644, 2147483648
          %v1677 = vxor.u32 %v1645, 2147483648
          %v1678 = vxor.u32 %v1646, 2147483648
          %v1679 = vxor.u32 %v1647, 2147483648
          %v1680 = vxor.u32 %v1648, 2147483648
          %v1681 = vxor.u32 %v1649, 2147483648
          %v1682 = vxor.u32 %v1650, 2147483648
          %v1683 = vxor.u32 %v1651, 2147483648
          %v1684 = vxor.u32 %v1652, 2147483648
          %v1685 = vxor.u32 %v1653, 2147483648
          %v1686 = vxor.u32 %v1654, 2147483648
          %v1687 = vxor.u32 %v1655, 2147483648
          %v1688 = vxor.u32 %v1656, 2147483648
          %v1689 = vxor.u32 %v1657, 2147483648
          %v1690 = vxor.u32 %v1658, 2147483648
          %v1691 = vxor.u32 %v1659, 2147483648
          %v1692 = vxor.u32 %v1660, 2147483648
          %v1693 = vxor.u32 %v1661, 2147483648
          %v1694 = vxor.u32 %v1662, 2147483648
          %v1695 = vxor.u32 %v1663, 2147483648
          %v1696 = vxor.u32 %v1664, 2147483648
          %v1697 = vxor.u32 %v1665, 2147483648
          %v1698 = vxor.u32 %v1666, 2147483648
          %v1699 = vxor.u32 %v1667, 2147483648
          %v1700 = vxor.u32 %v1668, 2147483648
          %v1701 = vxor.u32 %v1669, 2147483648
          %v1702 = vmul.f32 %v1670, 1.442695
          %v1703 = vpow.pop %v1702
          %v1704 = vmul.f32 %v1671, 1.442695
          %v1705 = vpow.pop %v1704
          %v1706 = vmul.f32 %v1672, 1.442695
          %v1707 = vpow.pop %v1706
          %v1708 = vmul.f32 %v1673, 1.442695
          %v1709 = vpow.pop %v1708
          %v1710 = vmul.f32 %v1674, 1.442695
          %v1711 = vpow.pop %v1710
          %v1712 = vmul.f32 %v1675, 1.442695
          %v1713 = vpow.pop %v1712
          %v1714 = vmul.f32 %v1676, 1.442695
          %v1715 = vpow.pop %v1714
          %v1716 = vmul.f32 %v1677, 1.442695
          %v1717 = vpow.pop %v1716
          %v1718 = vmul.f32 %v1678, 1.442695
          %v1719 = vpow.pop %v1718
          %v1720 = vmul.f32 %v1679, 1.442695
          %v1721 = vpow.pop %v1720
          %v1722 = vmul.f32 %v1680, 1.442695
          %v1723 = vpow.pop %v1722
          %v1724 = vmul.f32 %v1681, 1.442695
          %v1725 = vpow.pop %v1724
          %v1726 = vmul.f32 %v1682, 1.442695
          %v1727 = vpow.pop %v1726
          %v1728 = vmul.f32 %v1683, 1.442695
          %v1729 = vpow.pop %v1728
          %v1730 = vmul.f32 %v1684, 1.442695
          %v1731 = vpow.pop %v1730
          %v1732 = vmul.f32 %v1685, 1.442695
          %v1733 = vpow.pop %v1732
          %v1734 = vmul.f32 %v1686, 1.442695
          %v1735 = vpow.pop %v1734
          %v1736 = vmul.f32 %v1687, 1.442695
          %v1737 = vpow.pop %v1736
          %v1738 = vmul.f32 %v1688, 1.442695
          %v1739 = vpow.pop %v1738
          %v1740 = vmul.f32 %v1689, 1.442695
          %v1741 = vpow.pop %v1740
          %v1742 = vmul.f32 %v1690, 1.442695
          %v1743 = vpow.pop %v1742
          %v1744 = vmul.f32 %v1691, 1.442695
          %v1745 = vpow.pop %v1744
          %v1746 = vmul.f32 %v1692, 1.442695
          %v1747 = vpow.pop %v1746
          %v1748 = vmul.f32 %v1693, 1.442695
          %v1749 = vpow.pop %v1748
          %v1750 = vmul.f32 %v1694, 1.442695
          %v1751 = vpow.pop %v1750
          %v1752 = vmul.f32 %v1695, 1.442695
          %v1753 = vpow.pop %v1752
          %v1754 = vmul.f32 %v1696, 1.442695
          %v1755 = vpow.pop %v1754
          %v1756 = vmul.f32 %v1697, 1.442695
          %v1757 = vpow.pop %v1756
          %v1758 = vmul.f32 %v1698, 1.442695
          %v1759 = vpow.pop %v1758
          %v1760 = vmul.f32 %v1699, 1.442695
          %v1761 = vpow.pop %v1760
          %v1762 = vmul.f32 %v1700, 1.442695
          %v1763 = vpow.pop %v1762
          %v1764 = vmul.f32 %v1701, 1.442695
          %v1765 = vpow.pop %v1764
          %v1766 = vadd.f32 %v1703, 1.0
          %v1767 = vadd.f32 %v1705, 1.0
          %v1768 = vadd.f32 %v1707, 1.0
          %v1769 = vadd.f32 %v1709, 1.0
          %v1770 = vadd.f32 %v1711, 1.0
          %v1771 = vadd.f32 %v1713, 1.0
          %v1772 = vadd.f32 %v1715, 1.0
          %v1773 = vadd.f32 %v1717, 1.0
          %v1774 = vadd.f32 %v1719, 1.0
          %v1775 = vadd.f32 %v1721, 1.0
          %v1776 = vadd.f32 %v1723, 1.0
          %v1777 = vadd.f32 %v1725, 1.0
          %v1778 = vadd.f32 %v1727, 1.0
          %v1779 = vadd.f32 %v1729, 1.0
          %v1780 = vadd.f32 %v1731, 1.0
          %v1781 = vadd.f32 %v1733, 1.0
          %v1782 = vadd.f32 %v1735, 1.0
          %v1783 = vadd.f32 %v1737, 1.0
          %v1784 = vadd.f32 %v1739, 1.0
          %v1785 = vadd.f32 %v1741, 1.0
          %v1786 = vadd.f32 %v1743, 1.0
          %v1787 = vadd.f32 %v1745, 1.0
          %v1788 = vadd.f32 %v1747, 1.0
          %v1789 = vadd.f32 %v1749, 1.0
          %v1790 = vadd.f32 %v1751, 1.0
          %v1791 = vadd.f32 %v1753, 1.0
          %v1792 = vadd.f32 %v1755, 1.0
          %v1793 = vadd.f32 %v1757, 1.0
          %v1794 = vadd.f32 %v1759, 1.0
          %v1795 = vadd.f32 %v1761, 1.0
          %v1796 = vadd.f32 %v1763, 1.0
          %v1797 = vadd.f32 %v1765, 1.0
          %v1798 = vrcp.pop %v1766
          %v1799 = vmul.f32 1.0, %v1798
          %v1800 = vrcp.pop %v1767
          %v1801 = vmul.f32 1.0, %v1800
          %v1802 = vrcp.pop %v1768
          %v1803 = vmul.f32 1.0, %v1802
          %v1804 = vrcp.pop %v1769
          %v1805 = vmul.f32 1.0, %v1804
          %v1806 = vrcp.pop %v1770
          %v1807 = vmul.f32 1.0, %v1806
          %v1808 = vrcp.pop %v1771
          %v1809 = vmul.f32 1.0, %v1808
          %v1810 = vrcp.pop %v1772
          %v1811 = vmul.f32 1.0, %v1810
          %v1812 = vrcp.pop %v1773
          %v1813 = vmul.f32 1.0, %v1812
          %v1814 = vrcp.pop %v1774
          %v1815 = vmul.f32 1.0, %v1814
          %v1816 = vrcp.pop %v1775
          %v1817 = vmul.f32 1.0, %v1816
          %v1818 = vrcp.pop %v1776
          %v1819 = vmul.f32 1.0, %v1818
          %v1820 = vrcp.pop %v1777
          %v1821 = vmul.f32 1.0, %v1820
          %v1822 = vrcp.pop %v1778
          %v1823 = vmul.f32 1.0, %v1822
          %v1824 = vrcp.pop %v1779
          %v1825 = vmul.f32 1.0, %v1824
          %v1826 = vrcp.pop %v1780
          %v1827 = vmul.f32 1.0, %v1826
          %v1828 = vrcp.pop %v1781
          %v1829 = vmul.f32 1.0, %v1828
          %v1830 = vrcp.pop %v1782
          %v1831 = vmul.f32 1.0, %v1830
          %v1832 = vrcp.pop %v1783
          %v1833 = vmul.f32 1.0, %v1832
          %v1834 = vrcp.pop %v1784
          %v1835 = vmul.f32 1.0, %v1834
          %v1836 = vrcp.pop %v1785
          %v1837 = vmul.f32 1.0, %v1836
          %v1838 = vrcp.pop %v1786
          %v1839 = vmul.f32 1.0, %v1838
          %v1840 = vrcp.pop %v1787
          %v1841 = vmul.f32 1.0, %v1840
          %v1842 = vrcp.pop %v1788
          %v1843 = vmul.f32 1.0, %v1842
          %v1844 = vrcp.pop %v1789
          %v1845 = vmul.f32 1.0, %v1844
          %v1846 = vrcp.pop %v1790
          %v1847 = vmul.f32 1.0, %v1846
          %v1848 = vrcp.pop %v1791
          %v1849 = vmul.f32 1.0, %v1848
          %v1850 = vrcp.pop %v1792
          %v1851 = vmul.f32 1.0, %v1850
          %v1852 = vrcp.pop %v1793
          %v1853 = vmul.f32 1.0, %v1852
          %v1854 = vrcp.pop %v1794
          %v1855 = vmul.f32 1.0, %v1854
          %v1856 = vrcp.pop %v1795
          %v1857 = vmul.f32 1.0, %v1856
          %v1858 = vrcp.pop %v1796
          %v1859 = vmul.f32 1.0, %v1858
          %v1860 = vrcp.pop %v1797
          %v1861 = vmul.f32 1.0, %v1860
          %v1862 = vmul.f32 %v1638, %v1799
          %v1863 = vmul.f32 %v1639, %v1801
          %v1864 = vmul.f32 %v1640, %v1803
          %v1865 = vmul.f32 %v1641, %v1805
          %v1866 = vmul.f32 %v1642, %v1807
          %v1867 = vmul.f32 %v1643, %v1809
          %v1868 = vmul.f32 %v1644, %v1811
          %v1869 = vmul.f32 %v1645, %v1813
          %v1870 = vmul.f32 %v1646, %v1815
          %v1871 = vmul.f32 %v1647, %v1817
          %v1872 = vmul.f32 %v1648, %v1819
          %v1873 = vmul.f32 %v1649, %v1821
          %v1874 = vmul.f32 %v1650, %v1823
          %v1875 = vmul.f32 %v1651, %v1825
          %v1876 = vmul.f32 %v1652, %v1827
          %v1877 = vmul.f32 %v1653, %v1829
          %v1878 = vmul.f32 %v1654, %v1831
          %v1879 = vmul.f32 %v1655, %v1833
          %v1880 = vmul.f32 %v1656, %v1835
          %v1881 = vmul.f32 %v1657, %v1837
          %v1882 = vmul.f32 %v1658, %v1839
          %v1883 = vmul.f32 %v1659, %v1841
          %v1884 = vmul.f32 %v1660, %v1843
          %v1885 = vmul.f32 %v1661, %v1845
          %v1886 = vmul.f32 %v1662, %v1847
          %v1887 = vmul.f32 %v1663, %v1849
          %v1888 = vmul.f32 %v1664, %v1851
          %v1889 = vmul.f32 %v1665, %v1853
          %v1890 = vmul.f32 %v1666, %v1855
          %v1891 = vmul.f32 %v1667, %v1857
          %v1892 = vmul.f32 %v1668, %v1859
          %v1893 = vmul.f32 %v1669, %v1861
          %1894 = vst [vmem:[%s263] sm:$0xff] %v1862
          %1895 = vst [vmem:[%s263 + $0x8] sm:$0xff] %v1863
          %1896 = vst [vmem:[%s263 + $0x10] sm:$0xff] %v1864
          %1897 = vst [vmem:[%s263 + $0x18] sm:$0xff] %v1865
          %1898 = vst [vmem:[%s263 + $0x20] sm:$0xff] %v1866
          %1899 = vst [vmem:[%s263 + $0x28] sm:$0xff] %v1867
          %1900 = vst [vmem:[%s263 + $0x30] sm:$0xff] %v1868
          %1901 = vst [vmem:[%s263 + $0x38] sm:$0xff] %v1869
          %1902 = vst [vmem:[%s263 + $0x40] sm:$0xff] %v1870
          %1903 = vst [vmem:[%s263 + $0x48] sm:$0xff] %v1871
          %1904 = vst [vmem:[%s263 + $0x50] sm:$0xff] %v1872
          %1905 = vst [vmem:[%s263 + $0x58] sm:$0xff] %v1873
          %1906 = vst [vmem:[%s263 + $0x60] sm:$0xff] %v1874
          %1907 = vst [vmem:[%s263 + $0x68] sm:$0xff] %v1875
          %1908 = vst [vmem:[%s263 + $0x70] sm:$0xff] %v1876
          %1909 = vst [vmem:[%s263 + $0x78] sm:$0xff] %v1877
          %1910 = vst [vmem:[%s263 + $0x80] sm:$0xff] %v1878
          %1911 = vst [vmem:[%s263 + $0x88] sm:$0xff] %v1879
          %1912 = vst [vmem:[%s263 + $0x90] sm:$0xff] %v1880
          %1913 = vst [vmem:[%s263 + $0x98] sm:$0xff] %v1881
          %1914 = vst [vmem:[%s263 + $0xa0] sm:$0xff] %v1882
          %1915 = vst [vmem:[%s263 + $0xa8] sm:$0xff] %v1883
          %1916 = vst [vmem:[%s263 + $0xb0] sm:$0xff] %v1884
          %1917 = vst [vmem:[%s263 + $0xb8] sm:$0xff] %v1885
          %1918 = vst [vmem:[%s263 + $0xc0] sm:$0xff] %v1886
          %1919 = vst [vmem:[%s263 + $0xc8] sm:$0xff] %v1887
          %1920 = vst [vmem:[%s263 + $0xd0] sm:$0xff] %v1888
          %1921 = vst [vmem:[%s263 + $0xd8] sm:$0xff] %v1889
          %1922 = vst [vmem:[%s263 + $0xe0] sm:$0xff] %v1890
          %1923 = vst [vmem:[%s263 + $0xe8] sm:$0xff] %v1891
          %1924 = vst [vmem:[%s263 + $0xf0] sm:$0xff] %v1892
          %1925 = vst [vmem:[%s263 + $0xf8] sm:$0xff] %v1893
        $region52: #{tpu_custom_call.1} parent=31 // pred_fallthru
          _
        %s1926 = sand.u32 %s121, 1
        %s1927 = scalar_lea.sflag [#allocation4], %s1926
        %s1928 = sand.u32 %s121, 1
        %s1929 = smul.addr %s1928, 256
        %s1930 = scalar_lea.vmem [#allocation8], %s1929
        // Predicated region
        $region53: #{tpu_custom_call.1} parent=31 // pred_check
          %p1931 = pneg %p131
        $region54: #{tpu_custom_call.1} parent=31 // pred_check_branch
          %1933 = sbr.rel (%p1931) target = $region56
        $region55: #{tpu_custom_call.1} parent=31 // pred_region
          %s1934 = smul.u32 2, %s25
          %s1936 = ssub.s32 4096, 4096
          %1937 = vsyncadd %s1927, %s1936
          %s1938 = smul.addr %s1934, 128
          %s1939 = scalar_lea.hbm %s3, %s1938
          %s1940 = sshll.u32 %s1930, 4
          %s1941 = int_to_ptr.vmem [resolvable:$true] %s1940
          %1946 = dma.vmem_to_hbm [thread:$0]  %s1941, 4096, %s1939, %s1927, 256, 512, 16
        $region56: #{tpu_custom_call.1} parent=31 // pred_fallthru
          _
      $region32: #{tpu_custom_call.1} parent=5 // pred_fallthru
        _
      %p1947 = scmp.le.s32.totalorder 2, %s16
      // Predicated region
      $region57: #{tpu_custom_call.1} parent=5 // pred_check
        %p1948 = pneg %p1947
      $region58: #{tpu_custom_call.1} parent=5 // pred_check_branch
        %1950 = sbr.rel (%p1948) target = $region60
      $region59: #{tpu_custom_call.1} parent=5 // pred_region
        %s1951 = ssub.s32 %s16, 2
        // Predicated region
        $region61: #{tpu_custom_call.1} parent=59 // pred_check
          %p1952 = pneg %p137
        $region62: #{tpu_custom_call.1} parent=59 // pred_check_branch
          %1954 = sbr.rel (%p1952) target = $region64
        $region63: #{tpu_custom_call.1} parent=59 // pred_region
          %s1955 = sand.u32 %s122, 1
          %s1956 = scalar_lea.sflag [#allocation4], %s1955
          %s1957 = sand.u32 %s122, 1
          %s1958 = smul.addr %s1957, 256
          %s1959 = scalar_lea.vmem [#allocation8], %s1958
          %1960 = dma.done %s1956, 4096
        $region64: #{tpu_custom_call.1} parent=59 // pred_fallthru
          _
      $region60: #{tpu_custom_call.1} parent=5 // pred_fallthru
        _
    $region6: #{tpu_custom_call.1} parent=1 // loop_footer
      %s20 = sadd.s32 1, %s16
    $region7: #{tpu_custom_call.1} parent=1 // loop_footer_branch
      %15 = sbr.rel target = $region3
    $region8: #{tpu_custom_call.1} parent=1 // loop_exit
      _
    %1961 = vsyncpa [#allocation3], 1
    %s1962 = scalar_lea.sflag [#allocation3], 1
    %1963 = vsyncpa %s1962, 1
    %1964 = vsyncpa [#allocation6], 1
    %s1965 = scalar_lea.sflag [#allocation6], 1
    %1966 = vsyncpa %s1965, 1
    %1967 = vsyncpa [#allocation4], 1
    %s1968 = scalar_lea.sflag [#allocation4], 1
    %1969 = vsyncpa %s1968, 1

</llo_original>
